<compile_context>
chip_gen: v7x
topology: tpu7x:2x2x1
jax: 0.10.0
libtpu: 0.0.40
codegen_flags: <defaults>
</compile_context>

<pallas_src>
import jax
import jax.numpy as jnp
import numpy as np
from jax.experimental import pallas as pl
from jax.experimental.pallas import tpu as pltpu

# ---------------- model dims (small, synthetic) ----------------
B, S, D = 2, 8, 32        # batch, sequence length, d_model
DFF = 64                  # feed-forward hidden dim
C_OUT = 4                 # projection output dim
PAD_C = 128               # lane-dense padded projection width
L = 2                     # number of decoder layers
EPS = 1e-5


def _layer_norm(v, g, b):
    mu = jnp.mean(v, axis=-1, keepdims=True)
    var = jnp.mean((v - mu) ** 2, axis=-1, keepdims=True)
    return (v - mu) * jax.lax.rsqrt(var + EPS) * g + b


# ----------------------------------------------------------------------------
# Pallas kernel: single invocation (no grid), layers statically unrolled.
# All activations / parameters live in VMEM; hidden state is a local value.
# ----------------------------------------------------------------------------
def decoder_kernel(x_ref,
                   wqkv_ref, bqkv_ref, wo_ref, bo_ref,
                   g1_ref, be1_ref,
                   w1_ref, b1_ref, w2_ref, b2_ref,
                   g2_ref, be2_ref,
                   gf_ref, bf_ref, wp_ref, bp_ref,
                   out_ref):
    x2 = x_ref[...].astype(jnp.float32)                          # (B*S, D)

    # causal additive bias, built once and shared by all layers
    ri = jax.lax.broadcasted_iota(jnp.int32, (S, S), 0)
    ci = jax.lax.broadcasted_iota(jnp.int32, (S, S), 1)
    neg_bias = jnp.where(ci <= ri, 0.0, -1e30).astype(jnp.float32)   # (S, S)

    for l in range(L):                       # static unroll (L is tiny)
        # Q/K/V projections; 1/sqrt(D) score scale is pre-folded into Q.
        q = (jnp.dot(x2, wqkv_ref[3 * l + 0],
                     preferred_element_type=jnp.float32)
             + bqkv_ref[3 * l + 0]).reshape(B, S, D)
        k = (jnp.dot(x2, wqkv_ref[3 * l + 1],
                     preferred_element_type=jnp.float32)
             + bqkv_ref[3 * l + 1]).reshape(B, S, D)
        v = (jnp.dot(x2, wqkv_ref[3 * l + 2],
                     preferred_element_type=jnp.float32)
             + bqkv_ref[3 * l + 2]).reshape(B, S, D)

        # batched causal attention
        s = jnp.einsum("bqd,bkd->bqk", q, k,
                       preferred_element_type=jnp.float32)           # (B, S, S)
        s = s + neg_bias[None]
        s = s - jnp.max(s, axis=-1, keepdims=True)
        p = jnp.exp(s)
        denom = jnp.sum(p, axis=-1, keepdims=True)
        p = p * pl.reciprocal(denom, approx=True)                    # EUP slot
        a = jnp.einsum("bqk,bkd->bqd", p, v,
                       preferred_element_type=jnp.float32)           # (B, S, D)

        a2 = jnp.dot(a.reshape(B * S, D), wo_ref[l],
                     preferred_element_type=jnp.float32) + bo_ref[l]
        x2 = _layer_norm(x2 + a2, g1_ref[l], be1_ref[l])

        # position-wise feed-forward
        h = jnp.maximum(jnp.dot(x2, w1_ref[l],
                                preferred_element_type=jnp.float32) + b1_ref[l], 0.0)
        f = jnp.dot(h, w2_ref[l],
                    preferred_element_type=jnp.float32) + b2_ref[l]
        x2 = _layer_norm(x2 + f, g2_ref[l], be2_ref[l])

    # final LayerNorm + (lane-padded) Linear projection
    xf = _layer_norm(x2, gf_ref[...], bf_ref[...])
    y = jnp.dot(xf, wp_ref[...],
                preferred_element_type=jnp.float32) + bp_ref[...]    # (B*S, PAD_C)
    out_ref[...] = y.astype(out_ref.dtype)


# ----------------------------------------------------------------------------
# Wrapper
# ----------------------------------------------------------------------------
def _fuse_params(p):
    scale = 1.0 / np.sqrt(D)
    # stack q/k/v weights along a leading axis (no in-kernel lane slicing);
    # fold the attention score scale into the Q projection.
    wqkv = jnp.concatenate([jnp.stack([p["wq"][l] * scale, p["wk"][l], p["wv"][l]], 0)
                            for l in range(L)], axis=0)              # (3L, D, D)
    bqkv = jnp.concatenate([jnp.stack([p["bq"][l] * scale, p["bk"][l], p["bv"][l]], 0)
                            for l in range(L)], axis=0)              # (3L, 1, D)
    wp_pad = jnp.pad(p["wp"], ((0, 0), (0, PAD_C - C_OUT)))          # (D, PAD_C)
    bp_pad = jnp.pad(p["bp"], ((0, 0), (0, PAD_C - C_OUT)))          # (1, PAD_C)
    return [wqkv, bqkv, p["wo"], p["bo"],
            p["g1"], p["be1"],
            p["w1"], p["b1"], p["w2"], p["b2"],
            p["g2"], p["be2"],
            p["gf"], p["bf"], wp_pad, bp_pad]


def decoder_pallas(x, params):
    ordered = _fuse_params(params)
    n_in = 1 + len(ordered)
    vmem_spec = pl.BlockSpec(memory_space=pltpu.MemorySpace.VMEM)

    x2 = x.reshape(B * S, D)                 # flatten in the wrapper (free XLA op)
    out_padded = pl.pallas_call(
        decoder_kernel,
        out_shape=jax.ShapeDtypeStruct((B * S, PAD_C), jnp.float32),
        in_specs=[vmem_spec] * n_in,
        out_specs=vmem_spec,
    )(x2, *ordered)

    return out_padded.reshape(B, S, PAD_C)[..., :C_OUT]


# ----------------------------------------------------------------------------
# Pure-JAX reference (same math, unfused params) for a correctness check
# ----------------------------------------------------------------------------
def decoder_ref(x, params):
    x = x.astype(jnp.float32)
    causal = jnp.tril(jnp.ones((S, S), bool))
    scale = 1.0 / np.sqrt(D)
    for l in range(L):
        q = jnp.einsum("bsd,de->bse", x, params["wq"][l]) + params["bq"][l]
        k = jnp.einsum("bsd,de->bse", x, params["wk"][l]) + params["bk"][l]
        v = jnp.einsum("bsd,de->bse", x, params["wv"][l]) + params["bv"][l]
        s = jnp.einsum("bqd,bkd->bqk", q, k) * scale
        s = jnp.where(causal[None], s, -1e30)
        s = s - jnp.max(s, axis=-1, keepdims=True)
        p = jnp.exp(s)
        p = p / jnp.sum(p, axis=-1, keepdims=True)
        a = jnp.einsum("bqk,bkd->bqd", p, v)
        a = jnp.einsum("bsd,de->bse", a, params["wo"][l]) + params["bo"][l]
        x = _layer_norm(x + a, params["g1"][l], params["be1"][l])
        h = jnp.maximum(jnp.einsum("bsd,df->bsf", x, params["w1"][l]) + params["b1"][l], 0.0)
        f = jnp.einsum("bsf,fd->bsd", h, params["w2"][l]) + params["b2"][l]
        x = _layer_norm(x + f, params["g2"][l], params["be2"][l])
    x = _layer_norm(x, params["gf"], params["bf"])
    return jnp.einsum("bsd,dc->bsc", x, params["wp"]) + params["bp"]


def make_params(key):
    ks = jax.random.split(key, 24)
    n = lambda k, shape, s=0.05: jax.random.normal(k, shape, jnp.float32) * s
    return dict(
        wq=n(ks[0], (L, D, D)),   bq=n(ks[1], (L, 1, D)),
        wk=n(ks[2], (L, D, D)),   bk=n(ks[3], (L, 1, D)),
        wv=n(ks[4], (L, D, D)),   bv=n(ks[5], (L, 1, D)),
        wo=n(ks[6], (L, D, D)),   bo=n(ks[7], (L, 1, D)),
        g1=1.0 + n(ks[8], (L, 1, D)),  be1=n(ks[9], (L, 1, D)),
        w1=n(ks[10], (L, D, DFF)), b1=n(ks[11], (L, 1, DFF)),
        w2=n(ks[12], (L, DFF, D)), b2=n(ks[13], (L, 1, D)),
        g2=1.0 + n(ks[14], (L, 1, D)), be2=n(ks[15], (L, 1, D)),
        gf=1.0 + n(ks[16], (1, D)), bf=n(ks[17], (1, D)),
        wp=n(ks[18], (D, C_OUT)),   bp=n(ks[19], (1, C_OUT)),
    )


if __name__ == "__main__":
    key = jax.random.PRNGKey(0)
    k_x, k_p = jax.random.split(key)
    x = jax.random.normal(k_x, (B, S, D), jnp.float32)
    params = make_params(k_p)

    out = decoder_pallas(x, params)
    out = jax.block_until_ready(out)

    ref = jax.block_until_ready(decoder_ref(x, params))
    np.testing.assert_allclose(np.asarray(out), np.asarray(ref), atol=2e-3, rtol=2e-3)

    print("KERNEL_OK")
</pallas_src>

<mosaic_0001>
module attributes {stable_mosaic.version = 11 : i64} {
  func.func @decoder_kernel(%arg0: memref<16x32xf32, #tpu.memory_space<vmem>>, %arg1: memref<6x32x32xf32, #tpu.memory_space<vmem>>, %arg2: memref<6x1x32xf32, #tpu.memory_space<vmem>>, %arg3: memref<2x32x32xf32, #tpu.memory_space<vmem>>, %arg4: memref<2x1x32xf32, #tpu.memory_space<vmem>>, %arg5: memref<2x1x32xf32, #tpu.memory_space<vmem>>, %arg6: memref<2x1x32xf32, #tpu.memory_space<vmem>>, %arg7: memref<2x32x64xf32, #tpu.memory_space<vmem>>, %arg8: memref<2x1x64xf32, #tpu.memory_space<vmem>>, %arg9: memref<2x64x32xf32, #tpu.memory_space<vmem>>, %arg10: memref<2x1x32xf32, #tpu.memory_space<vmem>>, %arg11: memref<2x1x32xf32, #tpu.memory_space<vmem>>, %arg12: memref<2x1x32xf32, #tpu.memory_space<vmem>>, %arg13: memref<1x32xf32, #tpu.memory_space<vmem>>, %arg14: memref<1x32xf32, #tpu.memory_space<vmem>>, %arg15: memref<32x128xf32, #tpu.memory_space<vmem>>, %arg16: memref<1x128xf32, #tpu.memory_space<vmem>>, %arg17: memref<16x128xf32, #tpu.memory_space<vmem>>) attributes {dimension_semantics = [], scalar_prefetch = 0 : i64, scratch_operands = 0 : i64, tpu.core_type = #tpu.core_type<tc>} {
    %c0 = arith.constant 0 : index
    %c0_0 = arith.constant 0 : index
    %0 = vector.load %arg0[%c0, %c0_0] : memref<16x32xf32, #tpu.memory_space<vmem>>, vector<16x32xf32>
    %1 = tpu.iota {dimensions = array<i32: 0>} : vector<8x8xi32>
    %2 = tpu.iota {dimensions = array<i32: 1>} : vector<8x8xi32>
    %3 = arith.cmpi sle, %2, %1 : vector<8x8xi32>
    %cst = arith.constant 0.000000e+00 : f32
    %cst_1 = arith.constant -1.000000e+30 : f32
    %4 = vector.broadcast %cst : f32 to vector<8x8xf32>
    %5 = vector.broadcast %cst_1 : f32 to vector<8x8xf32>
    %6 = arith.select %3, %4, %5 : vector<8x8xi1>, vector<8x8xf32>
    %c0_2 = arith.constant 0 : index
    %c0_3 = arith.constant 0 : index
    %c0_4 = arith.constant 0 : index
    %7 = vector.load %arg1[%c0_2, %c0_3, %c0_4] : memref<6x32x32xf32, #tpu.memory_space<vmem>>, vector<1x32x32xf32>
    %8 = vector.shape_cast %7 : vector<1x32x32xf32> to vector<32x32xf32>
    %cst_5 = arith.constant dense<0.000000e+00> : vector<16x32xf32>
    %9 = tpu.matmul %0, %8, %cst_5 {dimension_numbers = #tpu.dot_dimension_numbers<[1], [0], [0], [1], [0, 0, 1, 1], [], []>} : vector<16x32xf32>, vector<32x32xf32>, vector<16x32xf32> -> vector<16x32xf32>
    %c0_6 = arith.constant 0 : index
    %c0_7 = arith.constant 0 : index
    %c0_8 = arith.constant 0 : index
    %10 = vector.load %arg2[%c0_6, %c0_7, %c0_8] : memref<6x1x32xf32, #tpu.memory_space<vmem>>, vector<1x1x32xf32>
    %11 = vector.shape_cast %10 : vector<1x1x32xf32> to vector<1x32xf32>
    %12 = vector.broadcast %11 : vector<1x32xf32> to vector<16x32xf32>
    %13 = arith.addf %9, %12 : vector<16x32xf32>
    %14 = vector.shape_cast %13 : vector<16x32xf32> to vector<2x8x32xf32>
    %c1 = arith.constant 1 : index
    %c0_9 = arith.constant 0 : index
    %c0_10 = arith.constant 0 : index
    %15 = vector.load %arg1[%c1, %c0_9, %c0_10] : memref<6x32x32xf32, #tpu.memory_space<vmem>>, vector<1x32x32xf32>
    %16 = vector.shape_cast %15 : vector<1x32x32xf32> to vector<32x32xf32>
    %cst_11 = arith.constant dense<0.000000e+00> : vector<16x32xf32>
    %17 = tpu.matmul %0, %16, %cst_11 {dimension_numbers = #tpu.dot_dimension_numbers<[1], [0], [0], [1], [0, 0, 1, 1], [], []>} : vector<16x32xf32>, vector<32x32xf32>, vector<16x32xf32> -> vector<16x32xf32>
    %c1_12 = arith.constant 1 : index
    %c0_13 = arith.constant 0 : index
    %c0_14 = arith.constant 0 : index
    %18 = vector.load %arg2[%c1_12, %c0_13, %c0_14] : memref<6x1x32xf32, #tpu.memory_space<vmem>>, vector<1x1x32xf32>
    %19 = vector.shape_cast %18 : vector<1x1x32xf32> to vector<1x32xf32>
    %20 = vector.broadcast %19 : vector<1x32xf32> to vector<16x32xf32>
    %21 = arith.addf %17, %20 : vector<16x32xf32>
    %22 = vector.shape_cast %21 : vector<16x32xf32> to vector<2x8x32xf32>
    %c2 = arith.constant 2 : index
    %c0_15 = arith.constant 0 : index
    %c0_16 = arith.constant 0 : index
    %23 = vector.load %arg1[%c2, %c0_15, %c0_16] : memref<6x32x32xf32, #tpu.memory_space<vmem>>, vector<1x32x32xf32>
    %24 = vector.shape_cast %23 : vector<1x32x32xf32> to vector<32x32xf32>
    %cst_17 = arith.constant dense<0.000000e+00> : vector<16x32xf32>
    %25 = tpu.matmul %0, %24, %cst_17 {dimension_numbers = #tpu.dot_dimension_numbers<[1], [0], [0], [1], [0, 0, 1, 1], [], []>} : vector<16x32xf32>, vector<32x32xf32>, vector<16x32xf32> -> vector<16x32xf32>
    %c2_18 = arith.constant 2 : index
    %c0_19 = arith.constant 0 : index
    %c0_20 = arith.constant 0 : index
    %26 = vector.load %arg2[%c2_18, %c0_19, %c0_20] : memref<6x1x32xf32, #tpu.memory_space<vmem>>, vector<1x1x32xf32>
    %27 = vector.shape_cast %26 : vector<1x1x32xf32> to vector<1x32xf32>
    %28 = vector.broadcast %27 : vector<1x32xf32> to vector<16x32xf32>
    %29 = arith.addf %25, %28 : vector<16x32xf32>
    %30 = vector.shape_cast %29 : vector<16x32xf32> to vector<2x8x32xf32>
    "tpu.trace_start"() <{level = 10 : i32, message = "bqd,bkd->bqk"}> : () -> ()
    %cst_21 = arith.constant dense<0.000000e+00> : vector<2x8x8xf32>
    %31 = tpu.matmul %14, %22, %cst_21 {dimension_numbers = #tpu.dot_dimension_numbers<[2], [2], [1], [1], [0, 0, 0, 1, 1, 1], [0], [0]>} : vector<2x8x32xf32>, vector<2x8x32xf32>, vector<2x8x8xf32> -> vector<2x8x8xf32>
    "tpu.trace_stop"() : () -> ()
    %32 = vector.shape_cast %6 : vector<8x8xf32> to vector<1x8x8xf32>
    %33 = vector.broadcast %32 : vector<1x8x8xf32> to vector<2x8x8xf32>
    %34 = arith.addf %31, %33 : vector<2x8x8xf32>
    %cst_22 = arith.constant dense<0xFF800000> : vector<2x8xf32>
    %35 = vector.multi_reduction <maximumf>, %34, %cst_22 [2] : vector<2x8x8xf32> to vector<2x8xf32>
    %36 = vector.shape_cast %35 : vector<2x8xf32> to vector<2x8x1xf32>
    %37 = vector.broadcast %36 : vector<2x8x1xf32> to vector<2x8x8xf32>
    %38 = arith.subf %34, %37 : vector<2x8x8xf32>
    %39 = math.exp %38 : vector<2x8x8xf32>
    %cst_23 = arith.constant dense<0.000000e+00> : vector<2x8xf32>
    %40 = vector.multi_reduction <add>, %39, %cst_23 [2] : vector<2x8x8xf32> to vector<2x8xf32>
    %41 = vector.shape_cast %40 : vector<2x8xf32> to vector<2x8x1xf32>
    %42 = tpu.reciprocal %41 {approx = true} : vector<2x8x1xf32> -> vector<2x8x1xf32>
    %43 = vector.broadcast %42 : vector<2x8x1xf32> to vector<2x8x8xf32>
    %44 = arith.mulf %39, %43 : vector<2x8x8xf32>
    "tpu.trace_start"() <{level = 10 : i32, message = "bqk,bkd->bqd"}> : () -> ()
    %cst_24 = arith.constant dense<0.000000e+00> : vector<2x8x32xf32>
    %45 = tpu.matmul %44, %30, %cst_24 {dimension_numbers = #tpu.dot_dimension_numbers<[2], [1], [1], [2], [0, 0, 0, 1, 1, 2], [0], [0]>} : vector<2x8x8xf32>, vector<2x8x32xf32>, vector<2x8x32xf32> -> vector<2x8x32xf32>
    "tpu.trace_stop"() : () -> ()
    %46 = vector.shape_cast %45 : vector<2x8x32xf32> to vector<16x32xf32>
    %c0_25 = arith.constant 0 : index
    %c0_26 = arith.constant 0 : index
    %c0_27 = arith.constant 0 : index
    %47 = vector.load %arg3[%c0_25, %c0_26, %c0_27] : memref<2x32x32xf32, #tpu.memory_space<vmem>>, vector<1x32x32xf32>
    %48 = vector.shape_cast %47 : vector<1x32x32xf32> to vector<32x32xf32>
    %cst_28 = arith.constant dense<0.000000e+00> : vector<16x32xf32>
    %49 = tpu.matmul %46, %48, %cst_28 {dimension_numbers = #tpu.dot_dimension_numbers<[1], [0], [0], [1], [0, 0, 1, 1], [], []>} : vector<16x32xf32>, vector<32x32xf32>, vector<16x32xf32> -> vector<16x32xf32>
    %c0_29 = arith.constant 0 : index
    %c0_30 = arith.constant 0 : index
    %c0_31 = arith.constant 0 : index
    %50 = vector.load %arg4[%c0_29, %c0_30, %c0_31] : memref<2x1x32xf32, #tpu.memory_space<vmem>>, vector<1x1x32xf32>
    %51 = vector.shape_cast %50 : vector<1x1x32xf32> to vector<1x32xf32>
    %52 = vector.broadcast %51 : vector<1x32xf32> to vector<16x32xf32>
    %53 = arith.addf %49, %52 : vector<16x32xf32>
    %54 = arith.addf %0, %53 : vector<16x32xf32>
    %c0_32 = arith.constant 0 : index
    %c0_33 = arith.constant 0 : index
    %c0_34 = arith.constant 0 : index
    %55 = vector.load %arg5[%c0_32, %c0_33, %c0_34] : memref<2x1x32xf32, #tpu.memory_space<vmem>>, vector<1x1x32xf32>
    %56 = vector.shape_cast %55 : vector<1x1x32xf32> to vector<1x32xf32>
    %c0_35 = arith.constant 0 : index
    %c0_36 = arith.constant 0 : index
    %c0_37 = arith.constant 0 : index
    %57 = vector.load %arg6[%c0_35, %c0_36, %c0_37] : memref<2x1x32xf32, #tpu.memory_space<vmem>>, vector<1x1x32xf32>
    %58 = vector.shape_cast %57 : vector<1x1x32xf32> to vector<1x32xf32>
    %cst_38 = arith.constant dense<0.000000e+00> : vector<16xf32>
    %59 = vector.multi_reduction <add>, %54, %cst_38 [1] : vector<16x32xf32> to vector<16xf32>
    %60 = vector.shape_cast %59 : vector<16xf32> to vector<16x1xf32>
    %cst_39 = arith.constant 3.200000e+01 : f32
    %61 = vector.broadcast %cst_39 : f32 to vector<16x1xf32>
    %62 = arith.divf %60, %61 : vector<16x1xf32>
    %63 = vector.broadcast %62 : vector<16x1xf32> to vector<16x32xf32>
    %64 = arith.subf %54, %63 : vector<16x32xf32>
    %65 = arith.mulf %64, %64 : vector<16x32xf32>
    %cst_40 = arith.constant dense<0.000000e+00> : vector<16xf32>
    %66 = vector.multi_reduction <add>, %65, %cst_40 [1] : vector<16x32xf32> to vector<16xf32>
    %67 = vector.shape_cast %66 : vector<16xf32> to vector<16x1xf32>
    %cst_41 = arith.constant 3.200000e+01 : f32
    %68 = vector.broadcast %cst_41 : f32 to vector<16x1xf32>
    %69 = arith.divf %67, %68 : vector<16x1xf32>
    %70 = vector.broadcast %62 : vector<16x1xf32> to vector<16x32xf32>
    %71 = arith.subf %54, %70 : vector<16x32xf32>
    %cst_42 = arith.constant 9.99999974E-6 : f32
    %72 = vector.broadcast %cst_42 : f32 to vector<16x1xf32>
    %73 = arith.addf %69, %72 : vector<16x1xf32>
    %74 = math.rsqrt %73 : vector<16x1xf32>
    %75 = vector.broadcast %74 : vector<16x1xf32> to vector<16x32xf32>
    %76 = arith.mulf %71, %75 : vector<16x32xf32>
    %77 = vector.broadcast %56 : vector<1x32xf32> to vector<16x32xf32>
    %78 = arith.mulf %76, %77 : vector<16x32xf32>
    %79 = vector.broadcast %58 : vector<1x32xf32> to vector<16x32xf32>
    %80 = arith.addf %78, %79 : vector<16x32xf32>
    %c0_43 = arith.constant 0 : index
    %c0_44 = arith.constant 0 : index
    %c0_45 = arith.constant 0 : index
    %81 = vector.load %arg7[%c0_43, %c0_44, %c0_45] : memref<2x32x64xf32, #tpu.memory_space<vmem>>, vector<1x32x64xf32>
    %82 = vector.shape_cast %81 : vector<1x32x64xf32> to vector<32x64xf32>
    %cst_46 = arith.constant dense<0.000000e+00> : vector<16x64xf32>
    %83 = tpu.matmul %80, %82, %cst_46 {dimension_numbers = #tpu.dot_dimension_numbers<[1], [0], [0], [1], [0, 0, 1, 1], [], []>} : vector<16x32xf32>, vector<32x64xf32>, vector<16x64xf32> -> vector<16x64xf32>
    %c0_47 = arith.constant 0 : index
    %c0_48 = arith.constant 0 : index
    %c0_49 = arith.constant 0 : index
    %84 = vector.load %arg8[%c0_47, %c0_48, %c0_49] : memref<2x1x64xf32, #tpu.memory_space<vmem>>, vector<1x1x64xf32>
    %85 = vector.shape_cast %84 : vector<1x1x64xf32> to vector<1x64xf32>
    %86 = vector.broadcast %85 : vector<1x64xf32> to vector<16x64xf32>
    %87 = arith.addf %83, %86 : vector<16x64xf32>
    %cst_50 = arith.constant 0.000000e+00 : f32
    %88 = vector.broadcast %cst_50 : f32 to vector<16x64xf32>
    %89 = arith.maximumf %87, %88 : vector<16x64xf32>
    %c0_51 = arith.constant 0 : index
    %c0_52 = arith.constant 0 : index
    %c0_53 = arith.constant 0 : index
    %90 = vector.load %arg9[%c0_51, %c0_52, %c0_53] : memref<2x64x32xf32, #tpu.memory_space<vmem>>, vector<1x64x32xf32>
    %91 = vector.shape_cast %90 : vector<1x64x32xf32> to vector<64x32xf32>
    %cst_54 = arith.constant dense<0.000000e+00> : vector<16x32xf32>
    %92 = tpu.matmul %89, %91, %cst_54 {dimension_numbers = #tpu.dot_dimension_numbers<[1], [0], [0], [1], [0, 0, 1, 1], [], []>} : vector<16x64xf32>, vector<64x32xf32>, vector<16x32xf32> -> vector<16x32xf32>
    %c0_55 = arith.constant 0 : index
    %c0_56 = arith.constant 0 : index
    %c0_57 = arith.constant 0 : index
    %93 = vector.load %arg10[%c0_55, %c0_56, %c0_57] : memref<2x1x32xf32, #tpu.memory_space<vmem>>, vector<1x1x32xf32>
    %94 = vector.shape_cast %93 : vector<1x1x32xf32> to vector<1x32xf32>
    %95 = vector.broadcast %94 : vector<1x32xf32> to vector<16x32xf32>
    %96 = arith.addf %92, %95 : vector<16x32xf32>
    %97 = arith.addf %80, %96 : vector<16x32xf32>
    %c0_58 = arith.constant 0 : index
    %c0_59 = arith.constant 0 : index
    %c0_60 = arith.constant 0 : index
    %98 = vector.load %arg11[%c0_58, %c0_59, %c0_60] : memref<2x1x32xf32, #tpu.memory_space<vmem>>, vector<1x1x32xf32>
    %99 = vector.shape_cast %98 : vector<1x1x32xf32> to vector<1x32xf32>
    %c0_61 = arith.constant 0 : index
    %c0_62 = arith.constant 0 : index
    %c0_63 = arith.constant 0 : index
    %100 = vector.load %arg12[%c0_61, %c0_62, %c0_63] : memref<2x1x32xf32, #tpu.memory_space<vmem>>, vector<1x1x32xf32>
    %101 = vector.shape_cast %100 : vector<1x1x32xf32> to vector<1x32xf32>
    %cst_64 = arith.constant dense<0.000000e+00> : vector<16xf32>
    %102 = vector.multi_reduction <add>, %97, %cst_64 [1] : vector<16x32xf32> to vector<16xf32>
    %103 = vector.shape_cast %102 : vector<16xf32> to vector<16x1xf32>
    %cst_65 = arith.constant 3.200000e+01 : f32
    %104 = vector.broadcast %cst_65 : f32 to vector<16x1xf32>
    %105 = arith.divf %103, %104 : vector<16x1xf32>
    %106 = vector.broadcast %105 : vector<16x1xf32> to vector<16x32xf32>
    %107 = arith.subf %97, %106 : vector<16x32xf32>
    %108 = arith.mulf %107, %107 : vector<16x32xf32>
    %cst_66 = arith.constant dense<0.000000e+00> : vector<16xf32>
    %109 = vector.multi_reduction <add>, %108, %cst_66 [1] : vector<16x32xf32> to vector<16xf32>
    %110 = vector.shape_cast %109 : vector<16xf32> to vector<16x1xf32>
    %cst_67 = arith.constant 3.200000e+01 : f32
    %111 = vector.broadcast %cst_67 : f32 to vector<16x1xf32>
    %112 = arith.divf %110, %111 : vector<16x1xf32>
    %113 = vector.broadcast %105 : vector<16x1xf32> to vector<16x32xf32>
    %114 = arith.subf %97, %113 : vector<16x32xf32>
    %cst_68 = arith.constant 9.99999974E-6 : f32
    %115 = vector.broadcast %cst_68 : f32 to vector<16x1xf32>
    %116 = arith.addf %112, %115 : vector<16x1xf32>
    %117 = math.rsqrt %116 : vector<16x1xf32>
    %118 = vector.broadcast %117 : vector<16x1xf32> to vector<16x32xf32>
    %119 = arith.mulf %114, %118 : vector<16x32xf32>
    %120 = vector.broadcast %99 : vector<1x32xf32> to vector<16x32xf32>
    %121 = arith.mulf %119, %120 : vector<16x32xf32>
    %122 = vector.broadcast %101 : vector<1x32xf32> to vector<16x32xf32>
    %123 = arith.addf %121, %122 : vector<16x32xf32>
    %c3 = arith.constant 3 : index
    %c0_69 = arith.constant 0 : index
    %c0_70 = arith.constant 0 : index
    %124 = vector.load %arg1[%c3, %c0_69, %c0_70] : memref<6x32x32xf32, #tpu.memory_space<vmem>>, vector<1x32x32xf32>
    %125 = vector.shape_cast %124 : vector<1x32x32xf32> to vector<32x32xf32>
    %cst_71 = arith.constant dense<0.000000e+00> : vector<16x32xf32>
    %126 = tpu.matmul %123, %125, %cst_71 {dimension_numbers = #tpu.dot_dimension_numbers<[1], [0], [0], [1], [0, 0, 1, 1], [], []>} : vector<16x32xf32>, vector<32x32xf32>, vector<16x32xf32> -> vector<16x32xf32>
    %c3_72 = arith.constant 3 : index
    %c0_73 = arith.constant 0 : index
    %c0_74 = arith.constant 0 : index
    %127 = vector.load %arg2[%c3_72, %c0_73, %c0_74] : memref<6x1x32xf32, #tpu.memory_space<vmem>>, vector<1x1x32xf32>
    %128 = vector.shape_cast %127 : vector<1x1x32xf32> to vector<1x32xf32>
    %129 = vector.broadcast %128 : vector<1x32xf32> to vector<16x32xf32>
    %130 = arith.addf %126, %129 : vector<16x32xf32>
    %131 = vector.shape_cast %130 : vector<16x32xf32> to vector<2x8x32xf32>
    %c4 = arith.constant 4 : index
    %c0_75 = arith.constant 0 : index
    %c0_76 = arith.constant 0 : index
    %132 = vector.load %arg1[%c4, %c0_75, %c0_76] : memref<6x32x32xf32, #tpu.memory_space<vmem>>, vector<1x32x32xf32>
    %133 = vector.shape_cast %132 : vector<1x32x32xf32> to vector<32x32xf32>
    %cst_77 = arith.constant dense<0.000000e+00> : vector<16x32xf32>
    %134 = tpu.matmul %123, %133, %cst_77 {dimension_numbers = #tpu.dot_dimension_numbers<[1], [0], [0], [1], [0, 0, 1, 1], [], []>} : vector<16x32xf32>, vector<32x32xf32>, vector<16x32xf32> -> vector<16x32xf32>
    %c4_78 = arith.constant 4 : index
    %c0_79 = arith.constant 0 : index
    %c0_80 = arith.constant 0 : index
    %135 = vector.load %arg2[%c4_78, %c0_79, %c0_80] : memref<6x1x32xf32, #tpu.memory_space<vmem>>, vector<1x1x32xf32>
    %136 = vector.shape_cast %135 : vector<1x1x32xf32> to vector<1x32xf32>
    %137 = vector.broadcast %136 : vector<1x32xf32> to vector<16x32xf32>
    %138 = arith.addf %134, %137 : vector<16x32xf32>
    %139 = vector.shape_cast %138 : vector<16x32xf32> to vector<2x8x32xf32>
    %c5 = arith.constant 5 : index
    %c0_81 = arith.constant 0 : index
    %c0_82 = arith.constant 0 : index
    %140 = vector.load %arg1[%c5, %c0_81, %c0_82] : memref<6x32x32xf32, #tpu.memory_space<vmem>>, vector<1x32x32xf32>
    %141 = vector.shape_cast %140 : vector<1x32x32xf32> to vector<32x32xf32>
    %cst_83 = arith.constant dense<0.000000e+00> : vector<16x32xf32>
    %142 = tpu.matmul %123, %141, %cst_83 {dimension_numbers = #tpu.dot_dimension_numbers<[1], [0], [0], [1], [0, 0, 1, 1], [], []>} : vector<16x32xf32>, vector<32x32xf32>, vector<16x32xf32> -> vector<16x32xf32>
    %c5_84 = arith.constant 5 : index
    %c0_85 = arith.constant 0 : index
    %c0_86 = arith.constant 0 : index
    %143 = vector.load %arg2[%c5_84, %c0_85, %c0_86] : memref<6x1x32xf32, #tpu.memory_space<vmem>>, vector<1x1x32xf32>
    %144 = vector.shape_cast %143 : vector<1x1x32xf32> to vector<1x32xf32>
    %145 = vector.broadcast %144 : vector<1x32xf32> to vector<16x32xf32>
    %146 = arith.addf %142, %145 : vector<16x32xf32>
    %147 = vector.shape_cast %146 : vector<16x32xf32> to vector<2x8x32xf32>
    "tpu.trace_start"() <{level = 10 : i32, message = "bqd,bkd->bqk"}> : () -> ()
    %cst_87 = arith.constant dense<0.000000e+00> : vector<2x8x8xf32>
    %148 = tpu.matmul %131, %139, %cst_87 {dimension_numbers = #tpu.dot_dimension_numbers<[2], [2], [1], [1], [0, 0, 0, 1, 1, 1], [0], [0]>} : vector<2x8x32xf32>, vector<2x8x32xf32>, vector<2x8x8xf32> -> vector<2x8x8xf32>
    "tpu.trace_stop"() : () -> ()
    %149 = vector.shape_cast %6 : vector<8x8xf32> to vector<1x8x8xf32>
    %150 = vector.broadcast %149 : vector<1x8x8xf32> to vector<2x8x8xf32>
    %151 = arith.addf %148, %150 : vector<2x8x8xf32>
    %cst_88 = arith.constant dense<0xFF800000> : vector<2x8xf32>
    %152 = vector.multi_reduction <maximumf>, %151, %cst_88 [2] : vector<2x8x8xf32> to vector<2x8xf32>
    %153 = vector.shape_cast %152 : vector<2x8xf32> to vector<2x8x1xf32>
    %154 = vector.broadcast %153 : vector<2x8x1xf32> to vector<2x8x8xf32>
    %155 = arith.subf %151, %154 : vector<2x8x8xf32>
    %156 = math.exp %155 : vector<2x8x8xf32>
    %cst_89 = arith.constant dense<0.000000e+00> : vector<2x8xf32>
    %157 = vector.multi_reduction <add>, %156, %cst_89 [2] : vector<2x8x8xf32> to vector<2x8xf32>
    %158 = vector.shape_cast %157 : vector<2x8xf32> to vector<2x8x1xf32>
    %159 = tpu.reciprocal %158 {approx = true} : vector<2x8x1xf32> -> vector<2x8x1xf32>
    %160 = vector.broadcast %159 : vector<2x8x1xf32> to vector<2x8x8xf32>
    %161 = arith.mulf %156, %160 : vector<2x8x8xf32>
    "tpu.trace_start"() <{level = 10 : i32, message = "bqk,bkd->bqd"}> : () -> ()
    %cst_90 = arith.constant dense<0.000000e+00> : vector<2x8x32xf32>
    %162 = tpu.matmul %161, %147, %cst_90 {dimension_numbers = #tpu.dot_dimension_numbers<[2], [1], [1], [2], [0, 0, 0, 1, 1, 2], [0], [0]>} : vector<2x8x8xf32>, vector<2x8x32xf32>, vector<2x8x32xf32> -> vector<2x8x32xf32>
    "tpu.trace_stop"() : () -> ()
    %163 = vector.shape_cast %162 : vector<2x8x32xf32> to vector<16x32xf32>
    %c1_91 = arith.constant 1 : index
    %c0_92 = arith.constant 0 : index
    %c0_93 = arith.constant 0 : index
    %164 = vector.load %arg3[%c1_91, %c0_92, %c0_93] : memref<2x32x32xf32, #tpu.memory_space<vmem>>, vector<1x32x32xf32>
    %165 = vector.shape_cast %164 : vector<1x32x32xf32> to vector<32x32xf32>
    %cst_94 = arith.constant dense<0.000000e+00> : vector<16x32xf32>
    %166 = tpu.matmul %163, %165, %cst_94 {dimension_numbers = #tpu.dot_dimension_numbers<[1], [0], [0], [1], [0, 0, 1, 1], [], []>} : vector<16x32xf32>, vector<32x32xf32>, vector<16x32xf32> -> vector<16x32xf32>
    %c1_95 = arith.constant 1 : index
    %c0_96 = arith.constant 0 : index
    %c0_97 = arith.constant 0 : index
    %167 = vector.load %arg4[%c1_95, %c0_96, %c0_97] : memref<2x1x32xf32, #tpu.memory_space<vmem>>, vector<1x1x32xf32>
    %168 = vector.shape_cast %167 : vector<1x1x32xf32> to vector<1x32xf32>
    %169 = vector.broadcast %168 : vector<1x32xf32> to vector<16x32xf32>
    %170 = arith.addf %166, %169 : vector<16x32xf32>
    %171 = arith.addf %123, %170 : vector<16x32xf32>
    %c1_98 = arith.constant 1 : index
    %c0_99 = arith.constant 0 : index
    %c0_100 = arith.constant 0 : index
    %172 = vector.load %arg5[%c1_98, %c0_99, %c0_100] : memref<2x1x32xf32, #tpu.memory_space<vmem>>, vector<1x1x32xf32>
    %173 = vector.shape_cast %172 : vector<1x1x32xf32> to vector<1x32xf32>
    %c1_101 = arith.constant 1 : index
    %c0_102 = arith.constant 0 : index
    %c0_103 = arith.constant 0 : index
    %174 = vector.load %arg6[%c1_101, %c0_102, %c0_103] : memref<2x1x32xf32, #tpu.memory_space<vmem>>, vector<1x1x32xf32>
    %175 = vector.shape_cast %174 : vector<1x1x32xf32> to vector<1x32xf32>
    %cst_104 = arith.constant dense<0.000000e+00> : vector<16xf32>
    %176 = vector.multi_reduction <add>, %171, %cst_104 [1] : vector<16x32xf32> to vector<16xf32>
    %177 = vector.shape_cast %176 : vector<16xf32> to vector<16x1xf32>
    %cst_105 = arith.constant 3.200000e+01 : f32
    %178 = vector.broadcast %cst_105 : f32 to vector<16x1xf32>
    %179 = arith.divf %177, %178 : vector<16x1xf32>
    %180 = vector.broadcast %179 : vector<16x1xf32> to vector<16x32xf32>
    %181 = arith.subf %171, %180 : vector<16x32xf32>
    %182 = arith.mulf %181, %181 : vector<16x32xf32>
    %cst_106 = arith.constant dense<0.000000e+00> : vector<16xf32>
    %183 = vector.multi_reduction <add>, %182, %cst_106 [1] : vector<16x32xf32> to vector<16xf32>
    %184 = vector.shape_cast %183 : vector<16xf32> to vector<16x1xf32>
    %cst_107 = arith.constant 3.200000e+01 : f32
    %185 = vector.broadcast %cst_107 : f32 to vector<16x1xf32>
    %186 = arith.divf %184, %185 : vector<16x1xf32>
    %187 = vector.broadcast %179 : vector<16x1xf32> to vector<16x32xf32>
    %188 = arith.subf %171, %187 : vector<16x32xf32>
    %cst_108 = arith.constant 9.99999974E-6 : f32
    %189 = vector.broadcast %cst_108 : f32 to vector<16x1xf32>
    %190 = arith.addf %186, %189 : vector<16x1xf32>
    %191 = math.rsqrt %190 : vector<16x1xf32>
    %192 = vector.broadcast %191 : vector<16x1xf32> to vector<16x32xf32>
    %193 = arith.mulf %188, %192 : vector<16x32xf32>
    %194 = vector.broadcast %173 : vector<1x32xf32> to vector<16x32xf32>
    %195 = arith.mulf %193, %194 : vector<16x32xf32>
    %196 = vector.broadcast %175 : vector<1x32xf32> to vector<16x32xf32>
    %197 = arith.addf %195, %196 : vector<16x32xf32>
    %c1_109 = arith.constant 1 : index
    %c0_110 = arith.constant 0 : index
    %c0_111 = arith.constant 0 : index
    %198 = vector.load %arg7[%c1_109, %c0_110, %c0_111] : memref<2x32x64xf32, #tpu.memory_space<vmem>>, vector<1x32x64xf32>
    %199 = vector.shape_cast %198 : vector<1x32x64xf32> to vector<32x64xf32>
    %cst_112 = arith.constant dense<0.000000e+00> : vector<16x64xf32>
    %200 = tpu.matmul %197, %199, %cst_112 {dimension_numbers = #tpu.dot_dimension_numbers<[1], [0], [0], [1], [0, 0, 1, 1], [], []>} : vector<16x32xf32>, vector<32x64xf32>, vector<16x64xf32> -> vector<16x64xf32>
    %c1_113 = arith.constant 1 : index
    %c0_114 = arith.constant 0 : index
    %c0_115 = arith.constant 0 : index
    %201 = vector.load %arg8[%c1_113, %c0_114, %c0_115] : memref<2x1x64xf32, #tpu.memory_space<vmem>>, vector<1x1x64xf32>
    %202 = vector.shape_cast %201 : vector<1x1x64xf32> to vector<1x64xf32>
    %203 = vector.broadcast %202 : vector<1x64xf32> to vector<16x64xf32>
    %204 = arith.addf %200, %203 : vector<16x64xf32>
    %cst_116 = arith.constant 0.000000e+00 : f32
    %205 = vector.broadcast %cst_116 : f32 to vector<16x64xf32>
    %206 = arith.maximumf %204, %205 : vector<16x64xf32>
    %c1_117 = arith.constant 1 : index
    %c0_118 = arith.constant 0 : index
    %c0_119 = arith.constant 0 : index
    %207 = vector.load %arg9[%c1_117, %c0_118, %c0_119] : memref<2x64x32xf32, #tpu.memory_space<vmem>>, vector<1x64x32xf32>
    %208 = vector.shape_cast %207 : vector<1x64x32xf32> to vector<64x32xf32>
    %cst_120 = arith.constant dense<0.000000e+00> : vector<16x32xf32>
    %209 = tpu.matmul %206, %208, %cst_120 {dimension_numbers = #tpu.dot_dimension_numbers<[1], [0], [0], [1], [0, 0, 1, 1], [], []>} : vector<16x64xf32>, vector<64x32xf32>, vector<16x32xf32> -> vector<16x32xf32>
    %c1_121 = arith.constant 1 : index
    %c0_122 = arith.constant 0 : index
    %c0_123 = arith.constant 0 : index
    %210 = vector.load %arg10[%c1_121, %c0_122, %c0_123] : memref<2x1x32xf32, #tpu.memory_space<vmem>>, vector<1x1x32xf32>
    %211 = vector.shape_cast %210 : vector<1x1x32xf32> to vector<1x32xf32>
    %212 = vector.broadcast %211 : vector<1x32xf32> to vector<16x32xf32>
    %213 = arith.addf %209, %212 : vector<16x32xf32>
    %214 = arith.addf %197, %213 : vector<16x32xf32>
    %c1_124 = arith.constant 1 : index
    %c0_125 = arith.constant 0 : index
    %c0_126 = arith.constant 0 : index
    %215 = vector.load %arg11[%c1_124, %c0_125, %c0_126] : memref<2x1x32xf32, #tpu.memory_space<vmem>>, vector<1x1x32xf32>
    %216 = vector.shape_cast %215 : vector<1x1x32xf32> to vector<1x32xf32>
    %c1_127 = arith.constant 1 : index
    %c0_128 = arith.constant 0 : index
    %c0_129 = arith.constant 0 : index
    %217 = vector.load %arg12[%c1_127, %c0_128, %c0_129] : memref<2x1x32xf32, #tpu.memory_space<vmem>>, vector<1x1x32xf32>
    %218 = vector.shape_cast %217 : vector<1x1x32xf32> to vector<1x32xf32>
    %cst_130 = arith.constant dense<0.000000e+00> : vector<16xf32>
    %219 = vector.multi_reduction <add>, %214, %cst_130 [1] : vector<16x32xf32> to vector<16xf32>
    %220 = vector.shape_cast %219 : vector<16xf32> to vector<16x1xf32>
    %cst_131 = arith.constant 3.200000e+01 : f32
    %221 = vector.broadcast %cst_131 : f32 to vector<16x1xf32>
    %222 = arith.divf %220, %221 : vector<16x1xf32>
    %223 = vector.broadcast %222 : vector<16x1xf32> to vector<16x32xf32>
    %224 = arith.subf %214, %223 : vector<16x32xf32>
    %225 = arith.mulf %224, %224 : vector<16x32xf32>
    %cst_132 = arith.constant dense<0.000000e+00> : vector<16xf32>
    %226 = vector.multi_reduction <add>, %225, %cst_132 [1] : vector<16x32xf32> to vector<16xf32>
    %227 = vector.shape_cast %226 : vector<16xf32> to vector<16x1xf32>
    %cst_133 = arith.constant 3.200000e+01 : f32
    %228 = vector.broadcast %cst_133 : f32 to vector<16x1xf32>
    %229 = arith.divf %227, %228 : vector<16x1xf32>
    %230 = vector.broadcast %222 : vector<16x1xf32> to vector<16x32xf32>
    %231 = arith.subf %214, %230 : vector<16x32xf32>
    %cst_134 = arith.constant 9.99999974E-6 : f32
    %232 = vector.broadcast %cst_134 : f32 to vector<16x1xf32>
    %233 = arith.addf %229, %232 : vector<16x1xf32>
    %234 = math.rsqrt %233 : vector<16x1xf32>
    %235 = vector.broadcast %234 : vector<16x1xf32> to vector<16x32xf32>
    %236 = arith.mulf %231, %235 : vector<16x32xf32>
    %237 = vector.broadcast %216 : vector<1x32xf32> to vector<16x32xf32>
    %238 = arith.mulf %236, %237 : vector<16x32xf32>
    %239 = vector.broadcast %218 : vector<1x32xf32> to vector<16x32xf32>
    %240 = arith.addf %238, %239 : vector<16x32xf32>
    %c0_135 = arith.constant 0 : index
    %c0_136 = arith.constant 0 : index
    %241 = vector.load %arg13[%c0_135, %c0_136] : memref<1x32xf32, #tpu.memory_space<vmem>>, vector<1x32xf32>
    %c0_137 = arith.constant 0 : index
    %c0_138 = arith.constant 0 : index
    %242 = vector.load %arg14[%c0_137, %c0_138] : memref<1x32xf32, #tpu.memory_space<vmem>>, vector<1x32xf32>
    %cst_139 = arith.constant dense<0.000000e+00> : vector<16xf32>
    %243 = vector.multi_reduction <add>, %240, %cst_139 [1] : vector<16x32xf32> to vector<16xf32>
    %244 = vector.shape_cast %243 : vector<16xf32> to vector<16x1xf32>
    %cst_140 = arith.constant 3.200000e+01 : f32
    %245 = vector.broadcast %cst_140 : f32 to vector<16x1xf32>
    %246 = arith.divf %244, %245 : vector<16x1xf32>
    %247 = vector.broadcast %246 : vector<16x1xf32> to vector<16x32xf32>
    %248 = arith.subf %240, %247 : vector<16x32xf32>
    %249 = arith.mulf %248, %248 : vector<16x32xf32>
    %cst_141 = arith.constant dense<0.000000e+00> : vector<16xf32>
    %250 = vector.multi_reduction <add>, %249, %cst_141 [1] : vector<16x32xf32> to vector<16xf32>
    %251 = vector.shape_cast %250 : vector<16xf32> to vector<16x1xf32>
    %cst_142 = arith.constant 3.200000e+01 : f32
    %252 = vector.broadcast %cst_142 : f32 to vector<16x1xf32>
    %253 = arith.divf %251, %252 : vector<16x1xf32>
    %254 = vector.broadcast %246 : vector<16x1xf32> to vector<16x32xf32>
    %255 = arith.subf %240, %254 : vector<16x32xf32>
    %cst_143 = arith.constant 9.99999974E-6 : f32
    %256 = vector.broadcast %cst_143 : f32 to vector<16x1xf32>
    %257 = arith.addf %253, %256 : vector<16x1xf32>
    %258 = math.rsqrt %257 : vector<16x1xf32>
    %259 = vector.broadcast %258 : vector<16x1xf32> to vector<16x32xf32>
    %260 = arith.mulf %255, %259 : vector<16x32xf32>
    %261 = vector.broadcast %241 : vector<1x32xf32> to vector<16x32xf32>
    %262 = arith.mulf %260, %261 : vector<16x32xf32>
    %263 = vector.broadcast %242 : vector<1x32xf32> to vector<16x32xf32>
    %264 = arith.addf %262, %263 : vector<16x32xf32>
    %c0_144 = arith.constant 0 : index
    %c0_145 = arith.constant 0 : index
    %265 = vector.load %arg15[%c0_144, %c0_145] : memref<32x128xf32, #tpu.memory_space<vmem>>, vector<32x128xf32>
    %cst_146 = arith.constant dense<0.000000e+00> : vector<16x128xf32>
    %266 = tpu.matmul %264, %265, %cst_146 {dimension_numbers = #tpu.dot_dimension_numbers<[1], [0], [0], [1], [0, 0, 1, 1], [], []>} : vector<16x32xf32>, vector<32x128xf32>, vector<16x128xf32> -> vector<16x128xf32>
    %c0_147 = arith.constant 0 : index
    %c0_148 = arith.constant 0 : index
    %267 = vector.load %arg16[%c0_147, %c0_148] : memref<1x128xf32, #tpu.memory_space<vmem>>, vector<1x128xf32>
    %268 = vector.broadcast %267 : vector<1x128xf32> to vector<16x128xf32>
    %269 = arith.addf %266, %268 : vector<16x128xf32>
    %c0_149 = arith.constant 0 : index
    %c0_150 = arith.constant 0 : index
    %270 = vector.load %arg17[%c0_149, %c0_150] : memref<16x128xf32, #tpu.memory_space<vmem>>, vector<16x128xf32>
    tpu.vector_store %arg17[%c0_149, %c0_150], %269 {strides = array<i32>} : memref<16x128xf32, #tpu.memory_space<vmem>>, vector<16x128xf32>,
    return
  }
}

</mosaic_0001>

<llo_original>
// kernel: tpu_custom_call.1
$region0: #{tpu_custom_call.1}
  #allocation0 [shape = 'u32[]', space=smem, size = 0x4, offset = 0x4, fixed_abs, tag = 'smem constant byte address 0x4 - core index']
  #allocation1 [shape = 'u32[144,128]{1,0:T(1,128)}', space=vmem, size = 0x12000, scoped, tag = 'internal scratch']
  %s0 = inlined_call_operand.hbm [shape: f32[16,32], index: 0, kind: input, shape index: {}]
  %s1 = inlined_call_operand.vmem [shape: f32[6,32,32], index: 1, kind: input, shape index: {}]
  %s2 = inlined_call_operand.hbm [shape: f32[6,1,32], index: 2, kind: input, shape index: {}]
  %s3 = inlined_call_operand.hbm [shape: f32[2,32,32], index: 3, kind: input, shape index: {}]
  %s4 = inlined_call_operand.vmem [shape: f32[2,1,32], index: 4, kind: input, shape index: {}]
  %s5 = inlined_call_operand.hbm [shape: f32[2,1,32], index: 5, kind: input, shape index: {}]
  %s6 = inlined_call_operand.hbm [shape: f32[2,1,32], index: 6, kind: input, shape index: {}]
  %s7 = inlined_call_operand.hbm [shape: f32[2,32,64], index: 7, kind: input, shape index: {}]
  %s8 = inlined_call_operand.hbm [shape: f32[2,1,64], index: 8, kind: input, shape index: {}]
  %s9 = inlined_call_operand.vmem [shape: f32[2,64,32], index: 9, kind: input, shape index: {}]
  %s10 = inlined_call_operand.vmem [shape: f32[2,1,32], index: 10, kind: input, shape index: {}]
  %s11 = inlined_call_operand.vmem [shape: f32[2,1,32], index: 11, kind: input, shape index: {}]
  %s12 = inlined_call_operand.vmem [shape: f32[2,1,32], index: 12, kind: input, shape index: {}]
  %s13 = inlined_call_operand.vmem [shape: f32[1,32], index: 13, kind: input, shape index: {}]
  %s14 = inlined_call_operand.vmem [shape: f32[1,32], index: 14, kind: input, shape index: {}]
  %s15 = inlined_call_operand.vmem [shape: f32[32,128], index: 15, kind: input, shape index: {}]
  %s16 = inlined_call_operand.vmem [shape: f32[1,128], index: 16, kind: input, shape index: {}]
  %s17 = inlined_call_operand.hbm [shape: f32[16,128], index: 17, kind: output, shape index: {}]
  %s18 = sld [smem:[#allocation0]]
  $region106: #{tpu_custom_call.1} parent=0
    _
  %s20 = ssub.s32 1, %s18
  %s21 = scalar_select 0, %s20, %s18
  $region1: #{tpu_custom_call.1} parent=0
    #allocation2 [shape = 'u8[8192]{0}', space=vmem, size = 0x2000, scoped, tag = 'input window, operand 0, single buffered']
    #allocation3 [shape = 's32[1]{0}', space=sflag, size = 0x4, scoped, tag = 'scoped memory for tpu_custom_call.1']
    #allocation4 [shape = 's32[1]{0}', space=sflag, size = 0x4, scoped, tag = 'scoped memory for tpu_custom_call.1']
    #allocation5 [shape = 'u8[3072]{0}', space=vmem, size = 0xc00, scoped, tag = 'input window, operand 2, single buffered']
    #allocation6 [shape = 's32[1]{0}', space=sflag, size = 0x4, scoped, tag = 'scoped memory for tpu_custom_call.1']
    #allocation7 [shape = 'u8[32768]{0}', space=vmem, size = 0x8000, scoped, tag = 'input window, operand 3, single buffered']
    #allocation8 [shape = 'u8[1024]{0}', space=vmem, size = 0x400, scoped, tag = 'input window, operand 5, single buffered']
    #allocation9 [shape = 's32[1]{0}', space=sflag, size = 0x4, scoped, tag = 'scoped memory for tpu_custom_call.1']
    #allocation10 [shape = 'u8[1024]{0}', space=vmem, size = 0x400, scoped, tag = 'input window, operand 6, single buffered']
    #allocation11 [shape = 'u8[32768]{0}', space=vmem, size = 0x8000, scoped, tag = 'input window, operand 7, single buffered']
    #allocation12 [shape = 's32[1]{0}', space=sflag, size = 0x4, scoped, tag = 'scoped memory for tpu_custom_call.1']
    #allocation13 [shape = 'u8[1024]{0}', space=vmem, size = 0x400, scoped, tag = 'input window, operand 8, single buffered']
    #allocation14 [shape = 'u8[8192]{0}', space=vmem, size = 0x2000, scoped, tag = 'output window, operand 0, single buffered']
    %22 = vsyncpa [#allocation3], 0
    %23 = vsyncpa [#allocation6], 0
    %24 = vsyncpa [#allocation9], 0
    %25 = vsyncpa [#allocation12], 0
    %26 = vsyncpa [#allocation4], 0
    // Predicated region
    $region2: #{tpu_custom_call.1} parent=1 // pred_check
      _
    $region3: #{tpu_custom_call.1} parent=1 // pred_check_branch
      %28 = sbr.rel (0) target = $region5
    $region4: #{tpu_custom_call.1} parent=1 // pred_region
      %s30 = ssub.s32 256, 256
      %31 = vsyncadd [#allocation3], %s30
      %s32 = sshll.u32 [#allocation2], 4
      %s33 = int_to_ptr.vmem [resolvable:$true] %s32
      %38 = dma.hbm_to_vmem [thread:$0]  %s0, 256, %s33, [#allocation3], 128, 128, 8
    $region5: #{tpu_custom_call.1} parent=1 // pred_fallthru
      _
    // Predicated region
    $region6: #{tpu_custom_call.1} parent=1 // pred_check
      _
    $region7: #{tpu_custom_call.1} parent=1 // pred_check_branch
      %40 = sbr.rel (0) target = $region9
    $region8: #{tpu_custom_call.1} parent=1 // pred_region
      _
    $region9: #{tpu_custom_call.1} parent=1 // pred_fallthru
      _
    // Predicated region
    $region10: #{tpu_custom_call.1} parent=1 // pred_check
      _
    $region11: #{tpu_custom_call.1} parent=1 // pred_check_branch
      %42 = sbr.rel (0) target = $region13
    $region12: #{tpu_custom_call.1} parent=1 // pred_region
      %s44 = ssub.s32 96, 96
      %45 = vsyncadd [#allocation6], %s44
      %s46 = sshll.u32 [#allocation5], 4
      %s47 = int_to_ptr.vmem [resolvable:$true] %s46
      %52 = dma.hbm_to_vmem [thread:$0]  %s2, 96, %s47, [#allocation6], 16, 16, 1
    $region13: #{tpu_custom_call.1} parent=1 // pred_fallthru
      _
    // Predicated region
    $region14: #{tpu_custom_call.1} parent=1 // pred_check
      _
    $region15: #{tpu_custom_call.1} parent=1 // pred_check_branch
      %54 = sbr.rel (0) target = $region17
    $region16: #{tpu_custom_call.1} parent=1 // pred_region
      %s56 = ssub.s32 1024, 1024
      %57 = vsyncadd [#allocation6], %s56
      %s58 = sshll.u32 [#allocation7], 4
      %s59 = int_to_ptr.vmem [resolvable:$true] %s58
      %64 = dma.hbm_to_vmem [thread:$0]  %s3, 1024, %s59, [#allocation6], 128, 128, 8
    $region17: #{tpu_custom_call.1} parent=1 // pred_fallthru
      _
    // Predicated region
    $region18: #{tpu_custom_call.1} parent=1 // pred_check
      _
    $region19: #{tpu_custom_call.1} parent=1 // pred_check_branch
      %66 = sbr.rel (0) target = $region21
    $region20: #{tpu_custom_call.1} parent=1 // pred_region
      _
    $region21: #{tpu_custom_call.1} parent=1 // pred_fallthru
      _
    // Predicated region
    $region22: #{tpu_custom_call.1} parent=1 // pred_check
      _
    $region23: #{tpu_custom_call.1} parent=1 // pred_check_branch
      %68 = sbr.rel (0) target = $region25
    $region24: #{tpu_custom_call.1} parent=1 // pred_region
      %s70 = ssub.s32 32, 32
      %71 = vsyncadd [#allocation9], %s70
      %s72 = sshll.u32 [#allocation8], 4
      %s73 = int_to_ptr.vmem [resolvable:$true] %s72
      %78 = dma.hbm_to_vmem [thread:$0]  %s5, 32, %s73, [#allocation9], 16, 16, 1
    $region25: #{tpu_custom_call.1} parent=1 // pred_fallthru
      _
    // Predicated region
    $region26: #{tpu_custom_call.1} parent=1 // pred_check
      _
    $region27: #{tpu_custom_call.1} parent=1 // pred_check_branch
      %80 = sbr.rel (0) target = $region29
    $region28: #{tpu_custom_call.1} parent=1 // pred_region
      %s82 = ssub.s32 32, 32
      %83 = vsyncadd [#allocation9], %s82
      %s84 = sshll.u32 [#allocation10], 4
      %s85 = int_to_ptr.vmem [resolvable:$true] %s84
      %90 = dma.hbm_to_vmem [thread:$0]  %s6, 32, %s85, [#allocation9], 16, 16, 1
    $region29: #{tpu_custom_call.1} parent=1 // pred_fallthru
      _
    // Predicated region
    $region30: #{tpu_custom_call.1} parent=1 // pred_check
      _
    $region31: #{tpu_custom_call.1} parent=1 // pred_check_branch
      %92 = sbr.rel (0) target = $region33
    $region32: #{tpu_custom_call.1} parent=1 // pred_region
      %s94 = ssub.s32 1024, 1024
      %95 = vsyncadd [#allocation12], %s94
      %s96 = sshll.u32 [#allocation11], 4
      %s97 = int_to_ptr.vmem [resolvable:$true] %s96
      %102 = dma.hbm_to_vmem [thread:$0]  %s7, 1024, %s97, [#allocation12], 128, 128, 8
    $region33: #{tpu_custom_call.1} parent=1 // pred_fallthru
      _
    // Predicated region
    $region34: #{tpu_custom_call.1} parent=1 // pred_check
      _
    $region35: #{tpu_custom_call.1} parent=1 // pred_check_branch
      %104 = sbr.rel (0) target = $region37
    $region36: #{tpu_custom_call.1} parent=1 // pred_region
      %s106 = ssub.s32 32, 32
      %107 = vsyncadd [#allocation12], %s106
      %s108 = sshll.u32 [#allocation13], 4
      %s109 = int_to_ptr.vmem [resolvable:$true] %s108
      %114 = dma.hbm_to_vmem [thread:$0]  %s8, 32, %s109, [#allocation12], 16, 16, 1
    $region37: #{tpu_custom_call.1} parent=1 // pred_fallthru
      _
    // Predicated region
    $region38: #{tpu_custom_call.1} parent=1 // pred_check
      _
    $region39: #{tpu_custom_call.1} parent=1 // pred_check_branch
      %116 = sbr.rel (0) target = $region41
    $region40: #{tpu_custom_call.1} parent=1 // pred_region
      _
    $region41: #{tpu_custom_call.1} parent=1 // pred_fallthru
      _
    // Predicated region
    $region42: #{tpu_custom_call.1} parent=1 // pred_check
      _
    $region43: #{tpu_custom_call.1} parent=1 // pred_check_branch
      %118 = sbr.rel (0) target = $region45
    $region44: #{tpu_custom_call.1} parent=1 // pred_region
      _
    $region45: #{tpu_custom_call.1} parent=1 // pred_fallthru
      _
    // Predicated region
    $region46: #{tpu_custom_call.1} parent=1 // pred_check
      _
    $region47: #{tpu_custom_call.1} parent=1 // pred_check_branch
      %120 = sbr.rel (0) target = $region49
    $region48: #{tpu_custom_call.1} parent=1 // pred_region
      _
    $region49: #{tpu_custom_call.1} parent=1 // pred_fallthru
      _
    // Predicated region
    $region50: #{tpu_custom_call.1} parent=1 // pred_check
      _
    $region51: #{tpu_custom_call.1} parent=1 // pred_check_branch
      %122 = sbr.rel (0) target = $region53
    $region52: #{tpu_custom_call.1} parent=1 // pred_region
      _
    $region53: #{tpu_custom_call.1} parent=1 // pred_fallthru
      _
    // Predicated region
    $region54: #{tpu_custom_call.1} parent=1 // pred_check
      _
    $region55: #{tpu_custom_call.1} parent=1 // pred_check_branch
      %124 = sbr.rel (0) target = $region57
    $region56: #{tpu_custom_call.1} parent=1 // pred_region
      _
    $region57: #{tpu_custom_call.1} parent=1 // pred_fallthru
      _
    // Predicated region
    $region58: #{tpu_custom_call.1} parent=1 // pred_check
      _
    $region59: #{tpu_custom_call.1} parent=1 // pred_check_branch
      %126 = sbr.rel (0) target = $region61
    $region60: #{tpu_custom_call.1} parent=1 // pred_region
      _
    $region61: #{tpu_custom_call.1} parent=1 // pred_fallthru
      _
    // Predicated region
    $region62: #{tpu_custom_call.1} parent=1 // pred_check
      _
    $region63: #{tpu_custom_call.1} parent=1 // pred_check_branch
      %128 = sbr.rel (0) target = $region65
    $region64: #{tpu_custom_call.1} parent=1 // pred_region
      _
    $region65: #{tpu_custom_call.1} parent=1 // pred_fallthru
      _
    // Predicated region
    $region66: #{tpu_custom_call.1} parent=1 // pred_check
      _
    $region67: #{tpu_custom_call.1} parent=1 // pred_check_branch
      %130 = sbr.rel (0) target = $region69
    $region68: #{tpu_custom_call.1} parent=1 // pred_region
      _
    $region69: #{tpu_custom_call.1} parent=1 // pred_fallthru
      _
    // Predicated region
    $region70: #{tpu_custom_call.1} parent=1 // pred_check
      _
    $region71: #{tpu_custom_call.1} parent=1 // pred_check_branch
      %132 = sbr.rel (0) target = $region73
    $region72: #{tpu_custom_call.1} parent=1 // pred_region
      %133 = dma.done [#allocation3], 256
    $region73: #{tpu_custom_call.1} parent=1 // pred_fallthru
      _
    // Predicated region
    $region74: #{tpu_custom_call.1} parent=1 // pred_check
      _
    $region75: #{tpu_custom_call.1} parent=1 // pred_check_branch
      %135 = sbr.rel (0) target = $region77
    $region76: #{tpu_custom_call.1} parent=1 // pred_region
      %136 = dma.done [#allocation6], 96
    $region77: #{tpu_custom_call.1} parent=1 // pred_fallthru
      _
    // Predicated region
    $region78: #{tpu_custom_call.1} parent=1 // pred_check
      _
    $region79: #{tpu_custom_call.1} parent=1 // pred_check_branch
      %138 = sbr.rel (0) target = $region81
    $region80: #{tpu_custom_call.1} parent=1 // pred_region
      %139 = dma.done [#allocation6], 1024
    $region81: #{tpu_custom_call.1} parent=1 // pred_fallthru
      _
    // Predicated region
    $region82: #{tpu_custom_call.1} parent=1 // pred_check
      _
    $region83: #{tpu_custom_call.1} parent=1 // pred_check_branch
      %141 = sbr.rel (0) target = $region85
    $region84: #{tpu_custom_call.1} parent=1 // pred_region
      %142 = dma.done [#allocation9], 32
    $region85: #{tpu_custom_call.1} parent=1 // pred_fallthru
      _
    // Predicated region
    $region86: #{tpu_custom_call.1} parent=1 // pred_check
      _
    $region87: #{tpu_custom_call.1} parent=1 // pred_check_branch
      %144 = sbr.rel (0) target = $region89
    $region88: #{tpu_custom_call.1} parent=1 // pred_region
      %145 = dma.done [#allocation9], 32
    $region89: #{tpu_custom_call.1} parent=1 // pred_fallthru
      _
    // Predicated region
    $region90: #{tpu_custom_call.1} parent=1 // pred_check
      _
    $region91: #{tpu_custom_call.1} parent=1 // pred_check_branch
      %147 = sbr.rel (0) target = $region93
    $region92: #{tpu_custom_call.1} parent=1 // pred_region
      %148 = dma.done [#allocation12], 1024
    $region93: #{tpu_custom_call.1} parent=1 // pred_fallthru
      _
    // Predicated region
    $region94: #{tpu_custom_call.1} parent=1 // pred_check
      _
    $region95: #{tpu_custom_call.1} parent=1 // pred_check_branch
      %150 = sbr.rel (0) target = $region97
    $region96: #{tpu_custom_call.1} parent=1 // pred_region
      %151 = dma.done [#allocation12], 32
    $region97: #{tpu_custom_call.1} parent=1 // pred_fallthru
      _
    %v152 = vld [vmem:[#allocation2] sm:$0xff]
    %v153 = vld [vmem:[#allocation2 + $0x8] sm:$0xff]
    %v154 = vlaneseq
    %v155 = vshrl.u32 %v154, 7
    %v156 = vlaneseq
    %v157 = vand.u32 %v156, 127
    %vm158 = vcmp.le.s32.totalorder %v157, %v155
    %v159 = vsel %vm158, 0.0, -1e+30
    %v160 = vld [vmem:[%s1] sm:$0xff]
    %v161 = vld [vmem:[%s1 + $0x8] sm:$0xff]
    %v162 = vld [vmem:[%s1 + $0x10] sm:$0xff]
    %v163 = vld [vmem:[%s1 + $0x18] sm:$0xff]
    %v164 = vld [vmem:[#allocation5] sm:$0x1]
    %v166 = vlaneseq
    %v167 = vshrl.u32 %v166, 7
    %v168 = vsub.s32 0, %v167
    %v169 = vrot.slane %v164, %v168
    %vm171 = vcmask 261120
    %v173 = vsel %vm171, %v152, 0
    %v176 = vsel %vm171, %v153, 0
    %178 = vmatprep.subr.mxu0 0.0
    %179 = vmatpush1.msra.mxu0 %v160
    %180 = vmatprep.subr.mxu0 0.0
    %181 = vmatpush1.msra.mxu0 %v161
    %182 = vmatprep.subr.mxu0 0.0
    %183 = vmatpush1.msra.mxu0 %v162
    %184 = vmatprep.subr.mxu0 0.0
    %185 = vmatpush1.msra.mxu0 %v163
    %186 = vmatprep.subr.mxu0 0.0
    %187 = vmatpush1.msra.mxu0 0.0
    %188 = vmatprep.subr.mxu0 0.0
    %189 = vmatpush1.msra.mxu0 0.0
    %190 = vmatprep.subr.mxu0 0.0
    %191 = vmatpush1.msra.mxu0 0.0
    %192 = vmatprep.subr.mxu0 0.0
    %193 = vmatpush1.msra.mxu0 0.0
    %194 = vmatprep.subr.mxu0 0.0
    %195 = vmatpush1.msra.mxu0 0.0
    %196 = vmatprep.subr.mxu0 0.0
    %197 = vmatpush1.msra.mxu0 0.0
    %198 = vmatprep.subr.mxu0 0.0
    %199 = vmatpush1.msra.mxu0 0.0
    %200 = vmatprep.subr.mxu0 0.0
    %201 = vmatpush1.msra.mxu0 0.0
    %202 = vmatprep.subr.mxu0 0.0
    %203 = vmatpush1.msra.mxu0 0.0
    %204 = vmatprep.subr.mxu0 0.0
    %205 = vmatpush1.msra.mxu0 0.0
    %206 = vmatprep.subr.mxu0 0.0
    %207 = vmatpush1.msra.mxu0 0.0
    %208 = vmatprep.subr.mxu0 0.0
    %209 = vmatpush1.msra.mxu0 0.0
    %210 = vmatprep.subr.mxu0 0.0
    %211 = vmatpush1.msra.mxu0 0.0
    %212 = vmatprep.subr.mxu0 0.0
    %213 = vmatpush1.msra.mxu0 0.0
    %214 = vmatprep.subr.mxu0 0.0
    %215 = vmatpush1.msra.mxu0 0.0
    %216 = vmatprep.subr.mxu0 0.0
    %217 = vmatpush1.msra.mxu0 0.0
    %218 = vmatprep.subr.mxu0 0.0
    %219 = vmatpush1.msra.mxu0 0.0
    %220 = vmatprep.subr.mxu0 0.0
    %221 = vmatpush1.msra.mxu0 0.0
    %222 = vmatprep.subr.mxu0 0.0
    %223 = vmatpush1.msra.mxu0 0.0
    %224 = vmatprep.subr.mxu0 0.0
    %225 = vmatpush1.msra.mxu0 0.0
    %226 = vmatprep.subr.mxu0 0.0
    %227 = vmatpush1.msra.mxu0 0.0
    %228 = vmatprep.subr.mxu0 0.0
    %229 = vmatpush1.msra.mxu0 0.0
    %230 = vmatprep.subr.mxu0 0.0
    %231 = vmatpush1.msra.mxu0 0.0
    %232 = vmatprep.subr.mxu0 0.0
    %233 = vmatpush1.msra.mxu0 0.0
    %234 = vmatprep.subr.mxu0 0.0
    %235 = vmatpush1.msra.mxu0 0.0
    %236 = vmatprep.subr.mxu0 0.0
    %237 = vmatpush1.msra.mxu0 0.0
    %238 = vmatprep.subr.mxu0 0.0
    %239 = vmatpush1.msra.mxu0 0.0
    %240 = vmatprep.subr.mxu0 0.0
    %241 = vmatpush1.msra.mxu0 0.0
    %242 = vmatprep.mubr.f32.mxu0 0.0
    %243 = vmatmul.mubr.f32.gmra.mrb[0].mxu0 %v173
    %v244 = vpop.f32.mrb[0].mxu0
    %v245 = vadd.f32 %v169, %v244
    %v246 = vpop.f32.mrb[0].mxu0
    %247 = vmatprep.mubr.f32.mxu0 0.0
    %248 = vmatmul.mubr.f32.gmra.mrb[0].mxu0 %v176
    %v249 = vpop.f32.mrb[0].mxu0
    %v250 = vadd.f32 %v169, %v249
    %v251 = vpop.f32.mrb[0].mxu0
    %252 = vdwg.mxu0
    %s253 = scalar_lea.vmem %s1, 32
    %v254 = vld [vmem:[%s253] sm:$0xff]
    %v255 = vld [vmem:[%s253 + $0x8] sm:$0xff]
    %v256 = vld [vmem:[%s253 + $0x10] sm:$0xff]
    %v257 = vld [vmem:[%s253 + $0x18] sm:$0xff]
    %s258 = scalar_lea.vmem [#allocation5], 1
    %v259 = vld [vmem:[%s258] sm:$0x1]
    %v261 = vlaneseq
    %v262 = vshrl.u32 %v261, 7
    %v263 = vsub.s32 0, %v262
    %v264 = vrot.slane %v259, %v263
    %266 = vmatprep.subr.mxu0 0.0
    %267 = vmatpush1.msra.mxu0 %v254
    %268 = vmatprep.subr.mxu0 0.0
    %269 = vmatpush1.msra.mxu0 %v255
    %270 = vmatprep.subr.mxu0 0.0
    %271 = vmatpush1.msra.mxu0 %v256
    %272 = vmatprep.subr.mxu0 0.0
    %273 = vmatpush1.msra.mxu0 %v257
    %274 = vmatprep.subr.mxu0 0.0
    %275 = vmatpush1.msra.mxu0 0.0
    %276 = vmatprep.subr.mxu0 0.0
    %277 = vmatpush1.msra.mxu0 0.0
    %278 = vmatprep.subr.mxu0 0.0
    %279 = vmatpush1.msra.mxu0 0.0
    %280 = vmatprep.subr.mxu0 0.0
    %281 = vmatpush1.msra.mxu0 0.0
    %282 = vmatprep.subr.mxu0 0.0
    %283 = vmatpush1.msra.mxu0 0.0
    %284 = vmatprep.subr.mxu0 0.0
    %285 = vmatpush1.msra.mxu0 0.0
    %286 = vmatprep.subr.mxu0 0.0
    %287 = vmatpush1.msra.mxu0 0.0
    %288 = vmatprep.subr.mxu0 0.0
    %289 = vmatpush1.msra.mxu0 0.0
    %290 = vmatprep.subr.mxu0 0.0
    %291 = vmatpush1.msra.mxu0 0.0
    %292 = vmatprep.subr.mxu0 0.0
    %293 = vmatpush1.msra.mxu0 0.0
    %294 = vmatprep.subr.mxu0 0.0
    %295 = vmatpush1.msra.mxu0 0.0
    %296 = vmatprep.subr.mxu0 0.0
    %297 = vmatpush1.msra.mxu0 0.0
    %298 = vmatprep.subr.mxu0 0.0
    %299 = vmatpush1.msra.mxu0 0.0
    %300 = vmatprep.subr.mxu0 0.0
    %301 = vmatpush1.msra.mxu0 0.0
    %302 = vmatprep.subr.mxu0 0.0
    %303 = vmatpush1.msra.mxu0 0.0
    %304 = vmatprep.subr.mxu0 0.0
    %305 = vmatpush1.msra.mxu0 0.0
    %306 = vmatprep.subr.mxu0 0.0
    %307 = vmatpush1.msra.mxu0 0.0
    %308 = vmatprep.subr.mxu0 0.0
    %309 = vmatpush1.msra.mxu0 0.0
    %310 = vmatprep.subr.mxu0 0.0
    %311 = vmatpush1.msra.mxu0 0.0
    %312 = vmatprep.subr.mxu0 0.0
    %313 = vmatpush1.msra.mxu0 0.0
    %314 = vmatprep.subr.mxu0 0.0
    %315 = vmatpush1.msra.mxu0 0.0
    %316 = vmatprep.subr.mxu0 0.0
    %317 = vmatpush1.msra.mxu0 0.0
    %318 = vmatprep.subr.mxu0 0.0
    %319 = vmatpush1.msra.mxu0 0.0
    %320 = vmatprep.subr.mxu0 0.0
    %321 = vmatpush1.msra.mxu0 0.0
    %322 = vmatprep.subr.mxu0 0.0
    %323 = vmatpush1.msra.mxu0 0.0
    %324 = vmatprep.subr.mxu0 0.0
    %325 = vmatpush1.msra.mxu0 0.0
    %326 = vmatprep.subr.mxu0 0.0
    %327 = vmatpush1.msra.mxu0 0.0
    %328 = vmatprep.subr.mxu0 0.0
    %329 = vmatpush1.msra.mxu0 0.0
    %330 = vmatprep.mubr.f32.mxu0 0.0
    %331 = vmatmul.mubr.f32.gmra.mrb[0].mxu0 %v173
    %v332 = vpop.f32.mrb[0].mxu0
    %v333 = vadd.f32 %v264, %v332
    %v334 = vpop.f32.mrb[0].mxu0
    %335 = vmatprep.mubr.f32.mxu0 0.0
    %336 = vmatmul.mubr.f32.gmra.mrb[0].mxu0 %v176
    %v337 = vpop.f32.mrb[0].mxu0
    %v338 = vadd.f32 %v264, %v337
    %v339 = vpop.f32.mrb[0].mxu0
    %340 = vdwg.mxu0
    %s341 = scalar_lea.vmem %s1, 64
    %v342 = vld [vmem:[%s341] sm:$0xff]
    %v343 = vld [vmem:[%s341 + $0x8] sm:$0xff]
    %v344 = vld [vmem:[%s341 + $0x10] sm:$0xff]
    %v345 = vld [vmem:[%s341 + $0x18] sm:$0xff]
    %s346 = scalar_lea.vmem [#allocation5], 2
    %v347 = vld [vmem:[%s346] sm:$0x1]
    %v349 = vlaneseq
    %v350 = vshrl.u32 %v349, 7
    %v351 = vsub.s32 0, %v350
    %v352 = vrot.slane %v347, %v351
    %354 = vmatprep.subr.mxu0 0.0
    %355 = vmatpush1.msra.mxu0 %v342
    %356 = vmatprep.subr.mxu0 0.0
    %357 = vmatpush1.msra.mxu0 %v343
    %358 = vmatprep.subr.mxu0 0.0
    %359 = vmatpush1.msra.mxu0 %v344
    %360 = vmatprep.subr.mxu0 0.0
    %361 = vmatpush1.msra.mxu0 %v345
    %362 = vmatprep.subr.mxu0 0.0
    %363 = vmatpush1.msra.mxu0 0.0
    %364 = vmatprep.subr.mxu0 0.0
    %365 = vmatpush1.msra.mxu0 0.0
    %366 = vmatprep.subr.mxu0 0.0
    %367 = vmatpush1.msra.mxu0 0.0
    %368 = vmatprep.subr.mxu0 0.0
    %369 = vmatpush1.msra.mxu0 0.0
    %370 = vmatprep.subr.mxu0 0.0
    %371 = vmatpush1.msra.mxu0 0.0
    %372 = vmatprep.subr.mxu0 0.0
    %373 = vmatpush1.msra.mxu0 0.0
    %374 = vmatprep.subr.mxu0 0.0
    %375 = vmatpush1.msra.mxu0 0.0
    %376 = vmatprep.subr.mxu0 0.0
    %377 = vmatpush1.msra.mxu0 0.0
    %378 = vmatprep.subr.mxu0 0.0
    %379 = vmatpush1.msra.mxu0 0.0
    %380 = vmatprep.subr.mxu0 0.0
    %381 = vmatpush1.msra.mxu0 0.0
    %382 = vmatprep.subr.mxu0 0.0
    %383 = vmatpush1.msra.mxu0 0.0
    %384 = vmatprep.subr.mxu0 0.0
    %385 = vmatpush1.msra.mxu0 0.0
    %386 = vmatprep.subr.mxu0 0.0
    %387 = vmatpush1.msra.mxu0 0.0
    %388 = vmatprep.subr.mxu0 0.0
    %389 = vmatpush1.msra.mxu0 0.0
    %390 = vmatprep.subr.mxu0 0.0
    %391 = vmatpush1.msra.mxu0 0.0
    %392 = vmatprep.subr.mxu0 0.0
    %393 = vmatpush1.msra.mxu0 0.0
    %394 = vmatprep.subr.mxu0 0.0
    %395 = vmatpush1.msra.mxu0 0.0
    %396 = vmatprep.subr.mxu0 0.0
    %397 = vmatpush1.msra.mxu0 0.0
    %398 = vmatprep.subr.mxu0 0.0
    %399 = vmatpush1.msra.mxu0 0.0
    %400 = vmatprep.subr.mxu0 0.0
    %401 = vmatpush1.msra.mxu0 0.0
    %402 = vmatprep.subr.mxu0 0.0
    %403 = vmatpush1.msra.mxu0 0.0
    %404 = vmatprep.subr.mxu0 0.0
    %405 = vmatpush1.msra.mxu0 0.0
    %406 = vmatprep.subr.mxu0 0.0
    %407 = vmatpush1.msra.mxu0 0.0
    %408 = vmatprep.subr.mxu0 0.0
    %409 = vmatpush1.msra.mxu0 0.0
    %410 = vmatprep.subr.mxu0 0.0
    %411 = vmatpush1.msra.mxu0 0.0
    %412 = vmatprep.subr.mxu0 0.0
    %413 = vmatpush1.msra.mxu0 0.0
    %414 = vmatprep.subr.mxu0 0.0
    %415 = vmatpush1.msra.mxu0 0.0
    %416 = vmatprep.subr.mxu0 0.0
    %417 = vmatpush1.msra.mxu0 0.0
    %418 = vmatprep.mubr.f32.mxu0 0.0
    %419 = vmatmul.mubr.f32.gmra.mrb[0].mxu0 %v173
    %v420 = vpop.f32.mrb[0].mxu0
    %v421 = vadd.f32 %v352, %v420
    %v422 = vpop.f32.mrb[0].mxu0
    %423 = vmatprep.mubr.f32.mxu0 0.0
    %424 = vmatmul.mubr.f32.gmra.mrb[0].mxu0 %v176
    %v425 = vpop.f32.mrb[0].mxu0
    %v426 = vadd.f32 %v352, %v425
    %v427 = vpop.f32.mrb[0].mxu0
    %428 = vdwg.mxu0
    %v430 = vsel %vm171, %v245, 0
    %v433 = vsel %vm171, %v333, 0
    %435 = vmatprep.subr.mxu0 0.0
    %436 = vmatpush1.xpose.msra.mxu0 %v433
    %437 = vmatprep.subr.mxu0 0.0
    %438 = vmatpush1.xpose.msra.mxu0 0.0
    %439 = vmatprep.subr.mxu0 0.0
    %440 = vmatpush1.xpose.msra.mxu0 0.0
    %441 = vmatprep.subr.mxu0 0.0
    %442 = vmatpush1.xpose.msra.mxu0 0.0
    %443 = vmatprep.subr.mxu0 0.0
    %444 = vmatpush1.xpose.msra.mxu0 0.0
    %445 = vmatprep.subr.mxu0 0.0
    %446 = vmatpush1.xpose.msra.mxu0 0.0
    %447 = vmatprep.subr.mxu0 0.0
    %448 = vmatpush1.xpose.msra.mxu0 0.0
    %449 = vmatprep.subr.mxu0 0.0
    %450 = vmatpush1.xpose.msra.mxu0 0.0
    %451 = vmatprep.subr.mxu0 0.0
    %452 = vmatpush1.xpose.msra.mxu0 0.0
    %453 = vmatprep.subr.mxu0 0.0
    %454 = vmatpush1.xpose.msra.mxu0 0.0
    %455 = vmatprep.subr.mxu0 0.0
    %456 = vmatpush1.xpose.msra.mxu0 0.0
    %457 = vmatprep.subr.mxu0 0.0
    %458 = vmatpush1.xpose.msra.mxu0 0.0
    %459 = vmatprep.subr.mxu0 0.0
    %460 = vmatpush1.xpose.msra.mxu0 0.0
    %461 = vmatprep.subr.mxu0 0.0
    %462 = vmatpush1.xpose.msra.mxu0 0.0
    %463 = vmatprep.subr.mxu0 0.0
    %464 = vmatpush1.xpose.msra.mxu0 0.0
    %465 = vmatprep.subr.mxu0 0.0
    %466 = vmatpush1.xpose.msra.mxu0 0.0
    %467 = vmatprep.subr.mxu0 0.0
    %468 = vmatpush1.xpose.msra.mxu0 0.0
    %469 = vmatprep.subr.mxu0 0.0
    %470 = vmatpush1.xpose.msra.mxu0 0.0
    %471 = vmatprep.subr.mxu0 0.0
    %472 = vmatpush1.xpose.msra.mxu0 0.0
    %473 = vmatprep.subr.mxu0 0.0
    %474 = vmatpush1.xpose.msra.mxu0 0.0
    %475 = vmatprep.subr.mxu0 0.0
    %476 = vmatpush1.xpose.msra.mxu0 0.0
    %477 = vmatprep.subr.mxu0 0.0
    %478 = vmatpush1.xpose.msra.mxu0 0.0
    %479 = vmatprep.subr.mxu0 0.0
    %480 = vmatpush1.xpose.msra.mxu0 0.0
    %481 = vmatprep.subr.mxu0 0.0
    %482 = vmatpush1.xpose.msra.mxu0 0.0
    %483 = vmatprep.subr.mxu0 0.0
    %484 = vmatpush1.xpose.msra.mxu0 0.0
    %485 = vmatprep.subr.mxu0 0.0
    %486 = vmatpush1.xpose.msra.mxu0 0.0
    %487 = vmatprep.subr.mxu0 0.0
    %488 = vmatpush1.xpose.msra.mxu0 0.0
    %489 = vmatprep.subr.mxu0 0.0
    %490 = vmatpush1.xpose.msra.mxu0 0.0
    %491 = vmatprep.subr.mxu0 0.0
    %492 = vmatpush1.xpose.msra.mxu0 0.0
    %493 = vmatprep.subr.mxu0 0.0
    %494 = vmatpush1.xpose.msra.mxu0 0.0
    %495 = vmatprep.subr.mxu0 0.0
    %496 = vmatpush1.xpose.msra.mxu0 0.0
    %497 = vmatprep.subr.mxu0 0.0
    %498 = vmatpush1.xpose.msra.mxu0 0.0
    %499 = vmatprep.mubr.f32.mxu0 0.0
    %500 = vmatmul.mubr.f32.gmra.mrb[0].mxu0 %v430
    %v501 = vpop.f32.mrb[0].mxu0
    %v502 = vadd.f32 %v159, %v501
    %v503 = vpop.f32.mrb[0].mxu0
    %504 = vdwg.mxu0
    %v506 = vsel %vm171, %v250, 0
    %v509 = vsel %vm171, %v338, 0
    %511 = vmatprep.subr.mxu0 0.0
    %512 = vmatpush1.xpose.msra.mxu0 %v509
    %513 = vmatprep.subr.mxu0 0.0
    %514 = vmatpush1.xpose.msra.mxu0 0.0
    %515 = vmatprep.subr.mxu0 0.0
    %516 = vmatpush1.xpose.msra.mxu0 0.0
    %517 = vmatprep.subr.mxu0 0.0
    %518 = vmatpush1.xpose.msra.mxu0 0.0
    %519 = vmatprep.subr.mxu0 0.0
    %520 = vmatpush1.xpose.msra.mxu0 0.0
    %521 = vmatprep.subr.mxu0 0.0
    %522 = vmatpush1.xpose.msra.mxu0 0.0
    %523 = vmatprep.subr.mxu0 0.0
    %524 = vmatpush1.xpose.msra.mxu0 0.0
    %525 = vmatprep.subr.mxu0 0.0
    %526 = vmatpush1.xpose.msra.mxu0 0.0
    %527 = vmatprep.subr.mxu0 0.0
    %528 = vmatpush1.xpose.msra.mxu0 0.0
    %529 = vmatprep.subr.mxu0 0.0
    %530 = vmatpush1.xpose.msra.mxu0 0.0
    %531 = vmatprep.subr.mxu0 0.0
    %532 = vmatpush1.xpose.msra.mxu0 0.0
    %533 = vmatprep.subr.mxu0 0.0
    %534 = vmatpush1.xpose.msra.mxu0 0.0
    %535 = vmatprep.subr.mxu0 0.0
    %536 = vmatpush1.xpose.msra.mxu0 0.0
    %537 = vmatprep.subr.mxu0 0.0
    %538 = vmatpush1.xpose.msra.mxu0 0.0
    %539 = vmatprep.subr.mxu0 0.0
    %540 = vmatpush1.xpose.msra.mxu0 0.0
    %541 = vmatprep.subr.mxu0 0.0
    %542 = vmatpush1.xpose.msra.mxu0 0.0
    %543 = vmatprep.subr.mxu0 0.0
    %544 = vmatpush1.xpose.msra.mxu0 0.0
    %545 = vmatprep.subr.mxu0 0.0
    %546 = vmatpush1.xpose.msra.mxu0 0.0
    %547 = vmatprep.subr.mxu0 0.0
    %548 = vmatpush1.xpose.msra.mxu0 0.0
    %549 = vmatprep.subr.mxu0 0.0
    %550 = vmatpush1.xpose.msra.mxu0 0.0
    %551 = vmatprep.subr.mxu0 0.0
    %552 = vmatpush1.xpose.msra.mxu0 0.0
    %553 = vmatprep.subr.mxu0 0.0
    %554 = vmatpush1.xpose.msra.mxu0 0.0
    %555 = vmatprep.subr.mxu0 0.0
    %556 = vmatpush1.xpose.msra.mxu0 0.0
    %557 = vmatprep.subr.mxu0 0.0
    %558 = vmatpush1.xpose.msra.mxu0 0.0
    %559 = vmatprep.subr.mxu0 0.0
    %560 = vmatpush1.xpose.msra.mxu0 0.0
    %561 = vmatprep.subr.mxu0 0.0
    %562 = vmatpush1.xpose.msra.mxu0 0.0
    %563 = vmatprep.subr.mxu0 0.0
    %564 = vmatpush1.xpose.msra.mxu0 0.0
    %565 = vmatprep.subr.mxu0 0.0
    %566 = vmatpush1.xpose.msra.mxu0 0.0
    %567 = vmatprep.subr.mxu0 0.0
    %568 = vmatpush1.xpose.msra.mxu0 0.0
    %569 = vmatprep.subr.mxu0 0.0
    %570 = vmatpush1.xpose.msra.mxu0 0.0
    %571 = vmatprep.subr.mxu0 0.0
    %572 = vmatpush1.xpose.msra.mxu0 0.0
    %573 = vmatprep.subr.mxu0 0.0
    %574 = vmatpush1.xpose.msra.mxu0 0.0
    %575 = vmatprep.mubr.f32.mxu0 0.0
    %576 = vmatmul.mubr.f32.gmra.mrb[0].mxu0 %v506
    %v577 = vpop.f32.mrb[0].mxu0
    %v578 = vadd.f32 %v159, %v577
    %v579 = vpop.f32.mrb[0].mxu0
    %580 = vdwg.mxu0
    %vm581 = vcmask 64512
    %v582 = vsel %vm581, %v502, -inf
    %583 = vmax.xlane.f32.xlu0 %v582
    %v584 = vpop.xlane.xlu0 %583
    %v585 = vsel %vm581, %v578, -inf
    %586 = vmax.xlane.f32.xlu0 %v585
    %v587 = vpop.xlane.xlu0 %586
    %v588 = vsub.f32 %v502, %v584
    %v589 = vsub.f32 %v578, %v587
    %v590 = vmul.f32 %v588, 1.442695
    %v591 = vpow.pop %v590
    %v592 = vmul.f32 %v589, 1.442695
    %v593 = vpow.pop %v592
    %v594 = vsel %vm581, %v591, 0.0
    %595 = vadd.xlane.f32.xlu0 %v594
    %v596 = vpop.xlane.xlu0 %595
    %v597 = vsel %vm581, %v593, 0.0
    %598 = vadd.xlane.f32.xlu0 %v597
    %v599 = vpop.xlane.xlu0 %598
    %v600 = vrcp.pop %v596
    %v601 = vrcp.pop %v599
    %v602 = vmul.f32 %v591, %v600
    %v603 = vmul.f32 %v593, %v601
    %v605 = vsel %vm581, %v602, 0
    %607 = vmatprep.subr.mxu0 0.0
    %608 = vmatpush1.msra.mxu0 %v421
    %609 = vmatprep.subr.mxu0 0.0
    %610 = vmatpush1.msra.mxu0 0.0
    %611 = vmatprep.subr.mxu0 0.0
    %612 = vmatpush1.msra.mxu0 0.0
    %613 = vmatprep.subr.mxu0 0.0
    %614 = vmatpush1.msra.mxu0 0.0
    %615 = vmatprep.subr.mxu0 0.0
    %616 = vmatpush1.msra.mxu0 0.0
    %617 = vmatprep.subr.mxu0 0.0
    %618 = vmatpush1.msra.mxu0 0.0
    %619 = vmatprep.subr.mxu0 0.0
    %620 = vmatpush1.msra.mxu0 0.0
    %621 = vmatprep.subr.mxu0 0.0
    %622 = vmatpush1.msra.mxu0 0.0
    %623 = vmatprep.subr.mxu0 0.0
    %624 = vmatpush1.msra.mxu0 0.0
    %625 = vmatprep.subr.mxu0 0.0
    %626 = vmatpush1.msra.mxu0 0.0
    %627 = vmatprep.subr.mxu0 0.0
    %628 = vmatpush1.msra.mxu0 0.0
    %629 = vmatprep.subr.mxu0 0.0
    %630 = vmatpush1.msra.mxu0 0.0
    %631 = vmatprep.subr.mxu0 0.0
    %632 = vmatpush1.msra.mxu0 0.0
    %633 = vmatprep.subr.mxu0 0.0
    %634 = vmatpush1.msra.mxu0 0.0
    %635 = vmatprep.subr.mxu0 0.0
    %636 = vmatpush1.msra.mxu0 0.0
    %637 = vmatprep.subr.mxu0 0.0
    %638 = vmatpush1.msra.mxu0 0.0
    %639 = vmatprep.subr.mxu0 0.0
    %640 = vmatpush1.msra.mxu0 0.0
    %641 = vmatprep.subr.mxu0 0.0
    %642 = vmatpush1.msra.mxu0 0.0
    %643 = vmatprep.subr.mxu0 0.0
    %644 = vmatpush1.msra.mxu0 0.0
    %645 = vmatprep.subr.mxu0 0.0
    %646 = vmatpush1.msra.mxu0 0.0
    %647 = vmatprep.subr.mxu0 0.0
    %648 = vmatpush1.msra.mxu0 0.0
    %649 = vmatprep.subr.mxu0 0.0
    %650 = vmatpush1.msra.mxu0 0.0
    %651 = vmatprep.subr.mxu0 0.0
    %652 = vmatpush1.msra.mxu0 0.0
    %653 = vmatprep.subr.mxu0 0.0
    %654 = vmatpush1.msra.mxu0 0.0
    %655 = vmatprep.subr.mxu0 0.0
    %656 = vmatpush1.msra.mxu0 0.0
    %657 = vmatprep.subr.mxu0 0.0
    %658 = vmatpush1.msra.mxu0 0.0
    %659 = vmatprep.subr.mxu0 0.0
    %660 = vmatpush1.msra.mxu0 0.0
    %661 = vmatprep.subr.mxu0 0.0
    %662 = vmatpush1.msra.mxu0 0.0
    %663 = vmatprep.subr.mxu0 0.0
    %664 = vmatpush1.msra.mxu0 0.0
    %665 = vmatprep.subr.mxu0 0.0
    %666 = vmatpush1.msra.mxu0 0.0
    %667 = vmatprep.subr.mxu0 0.0
    %668 = vmatpush1.msra.mxu0 0.0
    %669 = vmatprep.subr.mxu0 0.0
    %670 = vmatpush1.msra.mxu0 0.0
    %671 = vmatprep.mubr.f32.mxu0 0.0
    %672 = vmatmul.mubr.f32.gmra.mrb[0].mxu0 %v605
    %v673 = vpop.f32.mrb[0].mxu0
    %v674 = vadd.f32 0.0, %v673
    %v675 = vpop.f32.mrb[0].mxu0
    %676 = vdwg.mxu0
    %v678 = vsel %vm581, %v603, 0
    %680 = vmatprep.subr.mxu0 0.0
    %681 = vmatpush1.msra.mxu0 %v426
    %682 = vmatprep.subr.mxu0 0.0
    %683 = vmatpush1.msra.mxu0 0.0
    %684 = vmatprep.subr.mxu0 0.0
    %685 = vmatpush1.msra.mxu0 0.0
    %686 = vmatprep.subr.mxu0 0.0
    %687 = vmatpush1.msra.mxu0 0.0
    %688 = vmatprep.subr.mxu0 0.0
    %689 = vmatpush1.msra.mxu0 0.0
    %690 = vmatprep.subr.mxu0 0.0
    %691 = vmatpush1.msra.mxu0 0.0
    %692 = vmatprep.subr.mxu0 0.0
    %693 = vmatpush1.msra.mxu0 0.0
    %694 = vmatprep.subr.mxu0 0.0
    %695 = vmatpush1.msra.mxu0 0.0
    %696 = vmatprep.subr.mxu0 0.0
    %697 = vmatpush1.msra.mxu0 0.0
    %698 = vmatprep.subr.mxu0 0.0
    %699 = vmatpush1.msra.mxu0 0.0
    %700 = vmatprep.subr.mxu0 0.0
    %701 = vmatpush1.msra.mxu0 0.0
    %702 = vmatprep.subr.mxu0 0.0
    %703 = vmatpush1.msra.mxu0 0.0
    %704 = vmatprep.subr.mxu0 0.0
    %705 = vmatpush1.msra.mxu0 0.0
    %706 = vmatprep.subr.mxu0 0.0
    %707 = vmatpush1.msra.mxu0 0.0
    %708 = vmatprep.subr.mxu0 0.0
    %709 = vmatpush1.msra.mxu0 0.0
    %710 = vmatprep.subr.mxu0 0.0
    %711 = vmatpush1.msra.mxu0 0.0
    %712 = vmatprep.subr.mxu0 0.0
    %713 = vmatpush1.msra.mxu0 0.0
    %714 = vmatprep.subr.mxu0 0.0
    %715 = vmatpush1.msra.mxu0 0.0
    %716 = vmatprep.subr.mxu0 0.0
    %717 = vmatpush1.msra.mxu0 0.0
    %718 = vmatprep.subr.mxu0 0.0
    %719 = vmatpush1.msra.mxu0 0.0
    %720 = vmatprep.subr.mxu0 0.0
    %721 = vmatpush1.msra.mxu0 0.0
    %722 = vmatprep.subr.mxu0 0.0
    %723 = vmatpush1.msra.mxu0 0.0
    %724 = vmatprep.subr.mxu0 0.0
    %725 = vmatpush1.msra.mxu0 0.0
    %726 = vmatprep.subr.mxu0 0.0
    %727 = vmatpush1.msra.mxu0 0.0
    %728 = vmatprep.subr.mxu0 0.0
    %729 = vmatpush1.msra.mxu0 0.0
    %730 = vmatprep.subr.mxu0 0.0
    %731 = vmatpush1.msra.mxu0 0.0
    %732 = vmatprep.subr.mxu0 0.0
    %733 = vmatpush1.msra.mxu0 0.0
    %734 = vmatprep.subr.mxu0 0.0
    %735 = vmatpush1.msra.mxu0 0.0
    %736 = vmatprep.subr.mxu0 0.0
    %737 = vmatpush1.msra.mxu0 0.0
    %738 = vmatprep.subr.mxu0 0.0
    %739 = vmatpush1.msra.mxu0 0.0
    %740 = vmatprep.subr.mxu0 0.0
    %741 = vmatpush1.msra.mxu0 0.0
    %742 = vmatprep.subr.mxu0 0.0
    %743 = vmatpush1.msra.mxu0 0.0
    %744 = vmatprep.mubr.f32.mxu0 0.0
    %745 = vmatmul.mubr.f32.gmra.mrb[0].mxu0 %v678
    %v746 = vpop.f32.mrb[0].mxu0
    %v747 = vadd.f32 0.0, %v746
    %v748 = vpop.f32.mrb[0].mxu0
    %749 = vdwg.mxu0
    %v750 = vld [vmem:[#allocation7] sm:$0xff]
    %v751 = vld [vmem:[#allocation7 + $0x8] sm:$0xff]
    %v752 = vld [vmem:[#allocation7 + $0x10] sm:$0xff]
    %v753 = vld [vmem:[#allocation7 + $0x18] sm:$0xff]
    %v754 = vld [vmem:[%s4] sm:$0x1]
    %v756 = vlaneseq
    %v757 = vshrl.u32 %v756, 7
    %v758 = vsub.s32 0, %v757
    %v759 = vrot.slane %v754, %v758
    %v762 = vsel %vm171, %v674, 0
    %v765 = vsel %vm171, %v747, 0
    %767 = vmatprep.subr.mxu0 0.0
    %768 = vmatpush1.msra.mxu0 %v750
    %769 = vmatprep.subr.mxu0 0.0
    %770 = vmatpush1.msra.mxu0 %v751
    %771 = vmatprep.subr.mxu0 0.0
    %772 = vmatpush1.msra.mxu0 %v752
    %773 = vmatprep.subr.mxu0 0.0
    %774 = vmatpush1.msra.mxu0 %v753
    %775 = vmatprep.subr.mxu0 0.0
    %776 = vmatpush1.msra.mxu0 0.0
    %777 = vmatprep.subr.mxu0 0.0
    %778 = vmatpush1.msra.mxu0 0.0
    %779 = vmatprep.subr.mxu0 0.0
    %780 = vmatpush1.msra.mxu0 0.0
    %781 = vmatprep.subr.mxu0 0.0
    %782 = vmatpush1.msra.mxu0 0.0
    %783 = vmatprep.subr.mxu0 0.0
    %784 = vmatpush1.msra.mxu0 0.0
    %785 = vmatprep.subr.mxu0 0.0
    %786 = vmatpush1.msra.mxu0 0.0
    %787 = vmatprep.subr.mxu0 0.0
    %788 = vmatpush1.msra.mxu0 0.0
    %789 = vmatprep.subr.mxu0 0.0
    %790 = vmatpush1.msra.mxu0 0.0
    %791 = vmatprep.subr.mxu0 0.0
    %792 = vmatpush1.msra.mxu0 0.0
    %793 = vmatprep.subr.mxu0 0.0
    %794 = vmatpush1.msra.mxu0 0.0
    %795 = vmatprep.subr.mxu0 0.0
    %796 = vmatpush1.msra.mxu0 0.0
    %797 = vmatprep.subr.mxu0 0.0
    %798 = vmatpush1.msra.mxu0 0.0
    %799 = vmatprep.subr.mxu0 0.0
    %800 = vmatpush1.msra.mxu0 0.0
    %801 = vmatprep.subr.mxu0 0.0
    %802 = vmatpush1.msra.mxu0 0.0
    %803 = vmatprep.subr.mxu0 0.0
    %804 = vmatpush1.msra.mxu0 0.0
    %805 = vmatprep.subr.mxu0 0.0
    %806 = vmatpush1.msra.mxu0 0.0
    %807 = vmatprep.subr.mxu0 0.0
    %808 = vmatpush1.msra.mxu0 0.0
    %809 = vmatprep.subr.mxu0 0.0
    %810 = vmatpush1.msra.mxu0 0.0
    %811 = vmatprep.subr.mxu0 0.0
    %812 = vmatpush1.msra.mxu0 0.0
    %813 = vmatprep.subr.mxu0 0.0
    %814 = vmatpush1.msra.mxu0 0.0
    %815 = vmatprep.subr.mxu0 0.0
    %816 = vmatpush1.msra.mxu0 0.0
    %817 = vmatprep.subr.mxu0 0.0
    %818 = vmatpush1.msra.mxu0 0.0
    %819 = vmatprep.subr.mxu0 0.0
    %820 = vmatpush1.msra.mxu0 0.0
    %821 = vmatprep.subr.mxu0 0.0
    %822 = vmatpush1.msra.mxu0 0.0
    %823 = vmatprep.subr.mxu0 0.0
    %824 = vmatpush1.msra.mxu0 0.0
    %825 = vmatprep.subr.mxu0 0.0
    %826 = vmatpush1.msra.mxu0 0.0
    %827 = vmatprep.subr.mxu0 0.0
    %828 = vmatpush1.msra.mxu0 0.0
    %829 = vmatprep.subr.mxu0 0.0
    %830 = vmatpush1.msra.mxu0 0.0
    %831 = vmatprep.mubr.f32.mxu0 0.0
    %832 = vmatmul.mubr.f32.gmra.mrb[0].mxu0 %v762
    %v833 = vpop.f32.mrb[0].mxu0
    %v834 = vadd.f32 %v759, %v833
    %v835 = vpop.f32.mrb[0].mxu0
    %836 = vmatprep.mubr.f32.mxu0 0.0
    %837 = vmatmul.mubr.f32.gmra.mrb[0].mxu0 %v765
    %v838 = vpop.f32.mrb[0].mxu0
    %v839 = vadd.f32 %v759, %v838
    %v840 = vpop.f32.mrb[0].mxu0
    %841 = vdwg.mxu0
    %v842 = vadd.f32 %v152, %v834
    %v843 = vadd.f32 %v153, %v839
    %v844 = vld [vmem:[#allocation8] sm:$0x1]
    %v845 = vld [vmem:[#allocation10] sm:$0x1]
    %v846 = vsel %vm171, %v842, 0.0
    %847 = vadd.xlane.f32.xlu0 %v846
    %v848 = vpop.xlane.xlu0 %847
    %v849 = vsel %vm171, %v843, 0.0
    %850 = vadd.xlane.f32.xlu0 %v849
    %v851 = vpop.xlane.xlu0 %850
    %v852 = vrcp.pop 32.0
    %v853 = vmul.f32 %v848, %v852
    %v854 = vmul.f32 %v851, %v852
    %v855 = vsub.f32 %v842, %v853
    %v856 = vsub.f32 %v843, %v854
    %v857 = vmul.f32 %v855, %v855
    %v858 = vmul.f32 %v856, %v856
    %v859 = vsel %vm171, %v857, 0.0
    %860 = vadd.xlane.f32.xlu0 %v859
    %v861 = vpop.xlane.xlu0 %860
    %v862 = vsel %vm171, %v858, 0.0
    %863 = vadd.xlane.f32.xlu0 %v862
    %v864 = vpop.xlane.xlu0 %863
    %v865 = vmul.f32 %v861, %v852
    %v866 = vmul.f32 %v864, %v852
    %v867 = vadd.f32 %v865, 1e-05
    %v868 = vadd.f32 %v866, 1e-05
    %v869 = vrsqrt.pop %v867
    %v870 = vrsqrt.pop %v868
    %v871 = vmul.f32 %v855, %v869
    %v872 = vmul.f32 %v856, %v870
    %v874 = vlaneseq
    %v875 = vshrl.u32 %v874, 7
    %v876 = vsub.s32 0, %v875
    %v877 = vrot.slane %v844, %v876
    %v879 = vmul.f32 %v871, %v877
    %v880 = vmul.f32 %v872, %v877
    %v882 = vlaneseq
    %v883 = vshrl.u32 %v882, 7
    %v884 = vsub.s32 0, %v883
    %v885 = vrot.slane %v845, %v884
    %v887 = vadd.f32 %v879, %v885
    %v888 = vadd.f32 %v880, %v885
    %v889 = vld [vmem:[#allocation11] sm:$0xff]
    %v890 = vld [vmem:[#allocation11 + $0x8] sm:$0xff]
    %v891 = vld [vmem:[#allocation11 + $0x10] sm:$0xff]
    %v892 = vld [vmem:[#allocation11 + $0x18] sm:$0xff]
    %v893 = vld [vmem:[#allocation13] sm:$0x1]
    %v895 = vlaneseq
    %v896 = vshrl.u32 %v895, 7
    %v897 = vsub.s32 0, %v896
    %v898 = vrot.slane %v893, %v897
    %v901 = vsel %vm171, %v887, 0
    %v904 = vsel %vm171, %v888, 0
    %906 = vmatprep.subr.mxu0 0.0
    %907 = vmatpush1.msra.mxu0 %v889
    %908 = vmatprep.subr.mxu0 0.0
    %909 = vmatpush1.msra.mxu0 %v890
    %910 = vmatprep.subr.mxu0 0.0
    %911 = vmatpush1.msra.mxu0 %v891
    %912 = vmatprep.subr.mxu0 0.0
    %913 = vmatpush1.msra.mxu0 %v892
    %914 = vmatprep.subr.mxu0 0.0
    %915 = vmatpush1.msra.mxu0 0.0
    %916 = vmatprep.subr.mxu0 0.0
    %917 = vmatpush1.msra.mxu0 0.0
    %918 = vmatprep.subr.mxu0 0.0
    %919 = vmatpush1.msra.mxu0 0.0
    %920 = vmatprep.subr.mxu0 0.0
    %921 = vmatpush1.msra.mxu0 0.0
    %922 = vmatprep.subr.mxu0 0.0
    %923 = vmatpush1.msra.mxu0 0.0
    %924 = vmatprep.subr.mxu0 0.0
    %925 = vmatpush1.msra.mxu0 0.0
    %926 = vmatprep.subr.mxu0 0.0
    %927 = vmatpush1.msra.mxu0 0.0
    %928 = vmatprep.subr.mxu0 0.0
    %929 = vmatpush1.msra.mxu0 0.0
    %930 = vmatprep.subr.mxu0 0.0
    %931 = vmatpush1.msra.mxu0 0.0
    %932 = vmatprep.subr.mxu0 0.0
    %933 = vmatpush1.msra.mxu0 0.0
    %934 = vmatprep.subr.mxu0 0.0
    %935 = vmatpush1.msra.mxu0 0.0
    %936 = vmatprep.subr.mxu0 0.0
    %937 = vmatpush1.msra.mxu0 0.0
    %938 = vmatprep.subr.mxu0 0.0
    %939 = vmatpush1.msra.mxu0 0.0
    %940 = vmatprep.subr.mxu0 0.0
    %941 = vmatpush1.msra.mxu0 0.0
    %942 = vmatprep.subr.mxu0 0.0
    %943 = vmatpush1.msra.mxu0 0.0
    %944 = vmatprep.subr.mxu0 0.0
    %945 = vmatpush1.msra.mxu0 0.0
    %946 = vmatprep.subr.mxu0 0.0
    %947 = vmatpush1.msra.mxu0 0.0
    %948 = vmatprep.subr.mxu0 0.0
    %949 = vmatpush1.msra.mxu0 0.0
    %950 = vmatprep.subr.mxu0 0.0
    %951 = vmatpush1.msra.mxu0 0.0
    %952 = vmatprep.subr.mxu0 0.0
    %953 = vmatpush1.msra.mxu0 0.0
    %954 = vmatprep.subr.mxu0 0.0
    %955 = vmatpush1.msra.mxu0 0.0
    %956 = vmatprep.subr.mxu0 0.0
    %957 = vmatpush1.msra.mxu0 0.0
    %958 = vmatprep.subr.mxu0 0.0
    %959 = vmatpush1.msra.mxu0 0.0
    %960 = vmatprep.subr.mxu0 0.0
    %961 = vmatpush1.msra.mxu0 0.0
    %962 = vmatprep.subr.mxu0 0.0
    %963 = vmatpush1.msra.mxu0 0.0
    %964 = vmatprep.subr.mxu0 0.0
    %965 = vmatpush1.msra.mxu0 0.0
    %966 = vmatprep.subr.mxu0 0.0
    %967 = vmatpush1.msra.mxu0 0.0
    %968 = vmatprep.subr.mxu0 0.0
    %969 = vmatpush1.msra.mxu0 0.0
    %970 = vmatprep.mubr.f32.mxu0 0.0
    %971 = vmatmul.mubr.f32.gmra.mrb[0].mxu0 %v901
    %v972 = vpop.f32.mrb[0].mxu0
    %v973 = vadd.f32 %v898, %v972
    %v974 = vpop.f32.mrb[0].mxu0
    %975 = vmatprep.mubr.f32.mxu0 0.0
    %976 = vmatmul.mubr.f32.gmra.mrb[0].mxu0 %v904
    %v977 = vpop.f32.mrb[0].mxu0
    %v978 = vadd.f32 %v898, %v977
    %v979 = vpop.f32.mrb[0].mxu0
    %980 = vdwg.mxu0
    %v981 = vmax.f32 %v973, 0.0
    %v982 = vmax.f32 %v978, 0.0
    %v983 = vld [vmem:[%s9] sm:$0xff]
    %v984 = vld [vmem:[%s9 + $0x8] sm:$0xff]
    %v985 = vld [vmem:[%s9 + $0x10] sm:$0xff]
    %v986 = vld [vmem:[%s9 + $0x18] sm:$0xff]
    %v987 = vld [vmem:[%s9 + $0x20] sm:$0xff]
    %v988 = vld [vmem:[%s9 + $0x28] sm:$0xff]
    %v989 = vld [vmem:[%s9 + $0x30] sm:$0xff]
    %v990 = vld [vmem:[%s9 + $0x38] sm:$0xff]
    %v991 = vld [vmem:[%s10] sm:$0x1]
    %v993 = vlaneseq
    %v994 = vshrl.u32 %v993, 7
    %v995 = vsub.s32 0, %v994
    %v996 = vrot.slane %v991, %v995
    %vm998 = vcmask 523264
    %v1000 = vsel %vm998, %v981, 0
    %v1003 = vsel %vm998, %v982, 0
    %1005 = vmatprep.subr.mxu0 0.0
    %1006 = vmatpush1.msra.mxu0 %v983
    %1007 = vmatprep.subr.mxu0 0.0
    %1008 = vmatpush1.msra.mxu0 %v984
    %1009 = vmatprep.subr.mxu0 0.0
    %1010 = vmatpush1.msra.mxu0 %v985
    %1011 = vmatprep.subr.mxu0 0.0
    %1012 = vmatpush1.msra.mxu0 %v986
    %1013 = vmatprep.subr.mxu0 0.0
    %1014 = vmatpush1.msra.mxu0 %v987
    %1015 = vmatprep.subr.mxu0 0.0
    %1016 = vmatpush1.msra.mxu0 %v988
    %1017 = vmatprep.subr.mxu0 0.0
    %1018 = vmatpush1.msra.mxu0 %v989
    %1019 = vmatprep.subr.mxu0 0.0
    %1020 = vmatpush1.msra.mxu0 %v990
    %1021 = vmatprep.subr.mxu0 0.0
    %1022 = vmatpush1.msra.mxu0 0.0
    %1023 = vmatprep.subr.mxu0 0.0
    %1024 = vmatpush1.msra.mxu0 0.0
    %1025 = vmatprep.subr.mxu0 0.0
    %1026 = vmatpush1.msra.mxu0 0.0
    %1027 = vmatprep.subr.mxu0 0.0
    %1028 = vmatpush1.msra.mxu0 0.0
    %1029 = vmatprep.subr.mxu0 0.0
    %1030 = vmatpush1.msra.mxu0 0.0
    %1031 = vmatprep.subr.mxu0 0.0
    %1032 = vmatpush1.msra.mxu0 0.0
    %1033 = vmatprep.subr.mxu0 0.0
    %1034 = vmatpush1.msra.mxu0 0.0
    %1035 = vmatprep.subr.mxu0 0.0
    %1036 = vmatpush1.msra.mxu0 0.0
    %1037 = vmatprep.subr.mxu0 0.0
    %1038 = vmatpush1.msra.mxu0 0.0
    %1039 = vmatprep.subr.mxu0 0.0
    %1040 = vmatpush1.msra.mxu0 0.0
    %1041 = vmatprep.subr.mxu0 0.0
    %1042 = vmatpush1.msra.mxu0 0.0
    %1043 = vmatprep.subr.mxu0 0.0
    %1044 = vmatpush1.msra.mxu0 0.0
    %1045 = vmatprep.subr.mxu0 0.0
    %1046 = vmatpush1.msra.mxu0 0.0
    %1047 = vmatprep.subr.mxu0 0.0
    %1048 = vmatpush1.msra.mxu0 0.0
    %1049 = vmatprep.subr.mxu0 0.0
    %1050 = vmatpush1.msra.mxu0 0.0
    %1051 = vmatprep.subr.mxu0 0.0
    %1052 = vmatpush1.msra.mxu0 0.0
    %1053 = vmatprep.subr.mxu0 0.0
    %1054 = vmatpush1.msra.mxu0 0.0
    %1055 = vmatprep.subr.mxu0 0.0
    %1056 = vmatpush1.msra.mxu0 0.0
    %1057 = vmatprep.subr.mxu0 0.0
    %1058 = vmatpush1.msra.mxu0 0.0
    %1059 = vmatprep.subr.mxu0 0.0
    %1060 = vmatpush1.msra.mxu0 0.0
    %1061 = vmatprep.subr.mxu0 0.0
    %1062 = vmatpush1.msra.mxu0 0.0
    %1063 = vmatprep.subr.mxu0 0.0
    %1064 = vmatpush1.msra.mxu0 0.0
    %1065 = vmatprep.subr.mxu0 0.0
    %1066 = vmatpush1.msra.mxu0 0.0
    %1067 = vmatprep.subr.mxu0 0.0
    %1068 = vmatpush1.msra.mxu0 0.0
    %1069 = vmatprep.mubr.f32.mxu0 0.0
    %1070 = vmatmul.mubr.f32.gmra.mrb[0].mxu0 %v1000
    %v1071 = vpop.f32.mrb[0].mxu0
    %v1072 = vadd.f32 %v996, %v1071
    %v1073 = vpop.f32.mrb[0].mxu0
    %1074 = vmatprep.mubr.f32.mxu0 0.0
    %1075 = vmatmul.mubr.f32.gmra.mrb[0].mxu0 %v1003
    %v1076 = vpop.f32.mrb[0].mxu0
    %v1077 = vadd.f32 %v996, %v1076
    %v1078 = vpop.f32.mrb[0].mxu0
    %1079 = vdwg.mxu0
    %v1080 = vadd.f32 %v887, %v1072
    %v1081 = vadd.f32 %v888, %v1077
    %v1082 = vld [vmem:[%s11] sm:$0x1]
    %v1083 = vld [vmem:[%s12] sm:$0x1]
    %v1084 = vsel %vm171, %v1080, 0.0
    %1085 = vadd.xlane.f32.xlu0 %v1084
    %v1086 = vpop.xlane.xlu0 %1085
    %v1087 = vsel %vm171, %v1081, 0.0
    %1088 = vadd.xlane.f32.xlu0 %v1087
    %v1089 = vpop.xlane.xlu0 %1088
    %v1090 = vmul.f32 %v1086, %v852
    %v1091 = vmul.f32 %v1089, %v852
    %v1092 = vsub.f32 %v1080, %v1090
    %v1093 = vsub.f32 %v1081, %v1091
    %v1094 = vmul.f32 %v1092, %v1092
    %v1095 = vmul.f32 %v1093, %v1093
    %v1096 = vsel %vm171, %v1094, 0.0
    %1097 = vadd.xlane.f32.xlu0 %v1096
    %v1098 = vpop.xlane.xlu0 %1097
    %v1099 = vsel %vm171, %v1095, 0.0
    %1100 = vadd.xlane.f32.xlu0 %v1099
    %v1101 = vpop.xlane.xlu0 %1100
    %v1102 = vmul.f32 %v1098, %v852
    %v1103 = vmul.f32 %v1101, %v852
    %v1104 = vadd.f32 %v1102, 1e-05
    %v1105 = vadd.f32 %v1103, 1e-05
    %v1106 = vrsqrt.pop %v1104
    %v1107 = vrsqrt.pop %v1105
    %v1108 = vmul.f32 %v1092, %v1106
    %v1109 = vmul.f32 %v1093, %v1107
    %v1111 = vlaneseq
    %v1112 = vshrl.u32 %v1111, 7
    %v1113 = vsub.s32 0, %v1112
    %v1114 = vrot.slane %v1082, %v1113
    %v1116 = vmul.f32 %v1108, %v1114
    %v1117 = vmul.f32 %v1109, %v1114
    %v1119 = vlaneseq
    %v1120 = vshrl.u32 %v1119, 7
    %v1121 = vsub.s32 0, %v1120
    %v1122 = vrot.slane %v1083, %v1121
    %v1124 = vadd.f32 %v1116, %v1122
    %v1125 = vadd.f32 %v1117, %v1122
    %s1126 = scalar_lea.vmem %s1, 96
    %v1127 = vld [vmem:[%s1126] sm:$0xff]
    %v1128 = vld [vmem:[%s1126 + $0x8] sm:$0xff]
    %v1129 = vld [vmem:[%s1126 + $0x10] sm:$0xff]
    %v1130 = vld [vmem:[%s1126 + $0x18] sm:$0xff]
    %s1131 = scalar_lea.vmem [#allocation5], 3
    %v1132 = vld [vmem:[%s1131] sm:$0x1]
    %v1134 = vlaneseq
    %v1135 = vshrl.u32 %v1134, 7
    %v1136 = vsub.s32 0, %v1135
    %v1137 = vrot.slane %v1132, %v1136
    %v1140 = vsel %vm171, %v1124, 0
    %v1143 = vsel %vm171, %v1125, 0
    %1145 = vmatprep.subr.mxu0 0.0
    %1146 = vmatpush1.msra.mxu0 %v1127
    %1147 = vmatprep.subr.mxu0 0.0
    %1148 = vmatpush1.msra.mxu0 %v1128
    %1149 = vmatprep.subr.mxu0 0.0
    %1150 = vmatpush1.msra.mxu0 %v1129
    %1151 = vmatprep.subr.mxu0 0.0
    %1152 = vmatpush1.msra.mxu0 %v1130
    %1153 = vmatprep.subr.mxu0 0.0
    %1154 = vmatpush1.msra.mxu0 0.0
    %1155 = vmatprep.subr.mxu0 0.0
    %1156 = vmatpush1.msra.mxu0 0.0
    %1157 = vmatprep.subr.mxu0 0.0
    %1158 = vmatpush1.msra.mxu0 0.0
    %1159 = vmatprep.subr.mxu0 0.0
    %1160 = vmatpush1.msra.mxu0 0.0
    %1161 = vmatprep.subr.mxu0 0.0
    %1162 = vmatpush1.msra.mxu0 0.0
    %1163 = vmatprep.subr.mxu0 0.0
    %1164 = vmatpush1.msra.mxu0 0.0
    %1165 = vmatprep.subr.mxu0 0.0
    %1166 = vmatpush1.msra.mxu0 0.0
    %1167 = vmatprep.subr.mxu0 0.0
    %1168 = vmatpush1.msra.mxu0 0.0
    %1169 = vmatprep.subr.mxu0 0.0
    %1170 = vmatpush1.msra.mxu0 0.0
    %1171 = vmatprep.subr.mxu0 0.0
    %1172 = vmatpush1.msra.mxu0 0.0
    %1173 = vmatprep.subr.mxu0 0.0
    %1174 = vmatpush1.msra.mxu0 0.0
    %1175 = vmatprep.subr.mxu0 0.0
    %1176 = vmatpush1.msra.mxu0 0.0
    %1177 = vmatprep.subr.mxu0 0.0
    %1178 = vmatpush1.msra.mxu0 0.0
    %1179 = vmatprep.subr.mxu0 0.0
    %1180 = vmatpush1.msra.mxu0 0.0
    %1181 = vmatprep.subr.mxu0 0.0
    %1182 = vmatpush1.msra.mxu0 0.0
    %1183 = vmatprep.subr.mxu0 0.0
    %1184 = vmatpush1.msra.mxu0 0.0
    %1185 = vmatprep.subr.mxu0 0.0
    %1186 = vmatpush1.msra.mxu0 0.0
    %1187 = vmatprep.subr.mxu0 0.0
    %1188 = vmatpush1.msra.mxu0 0.0
    %1189 = vmatprep.subr.mxu0 0.0
    %1190 = vmatpush1.msra.mxu0 0.0
    %1191 = vmatprep.subr.mxu0 0.0
    %1192 = vmatpush1.msra.mxu0 0.0
    %1193 = vmatprep.subr.mxu0 0.0
    %1194 = vmatpush1.msra.mxu0 0.0
    %1195 = vmatprep.subr.mxu0 0.0
    %1196 = vmatpush1.msra.mxu0 0.0
    %1197 = vmatprep.subr.mxu0 0.0
    %1198 = vmatpush1.msra.mxu0 0.0
    %1199 = vmatprep.subr.mxu0 0.0
    %1200 = vmatpush1.msra.mxu0 0.0
    %1201 = vmatprep.subr.mxu0 0.0
    %1202 = vmatpush1.msra.mxu0 0.0
    %1203 = vmatprep.subr.mxu0 0.0
    %1204 = vmatpush1.msra.mxu0 0.0
    %1205 = vmatprep.subr.mxu0 0.0
    %1206 = vmatpush1.msra.mxu0 0.0
    %1207 = vmatprep.subr.mxu0 0.0
    %1208 = vmatpush1.msra.mxu0 0.0
    %1209 = vmatprep.mubr.f32.mxu0 0.0
    %1210 = vmatmul.mubr.f32.gmra.mrb[0].mxu0 %v1140
    %v1211 = vpop.f32.mrb[0].mxu0
    %v1212 = vadd.f32 %v1137, %v1211
    %v1213 = vpop.f32.mrb[0].mxu0
    %1214 = vmatprep.mubr.f32.mxu0 0.0
    %1215 = vmatmul.mubr.f32.gmra.mrb[0].mxu0 %v1143
    %v1216 = vpop.f32.mrb[0].mxu0
    %v1217 = vadd.f32 %v1137, %v1216
    %v1218 = vpop.f32.mrb[0].mxu0
    %1219 = vdwg.mxu0
    %s1220 = scalar_lea.vmem %s1, 128
    %v1221 = vld [vmem:[%s1220] sm:$0xff]
    %v1222 = vld [vmem:[%s1220 + $0x8] sm:$0xff]
    %v1223 = vld [vmem:[%s1220 + $0x10] sm:$0xff]
    %v1224 = vld [vmem:[%s1220 + $0x18] sm:$0xff]
    %s1225 = scalar_lea.vmem [#allocation5], 4
    %v1226 = vld [vmem:[%s1225] sm:$0x1]
    %v1228 = vlaneseq
    %v1229 = vshrl.u32 %v1228, 7
    %v1230 = vsub.s32 0, %v1229
    %v1231 = vrot.slane %v1226, %v1230
    %1233 = vmatprep.subr.mxu0 0.0
    %1234 = vmatpush1.msra.mxu0 %v1221
    %1235 = vmatprep.subr.mxu0 0.0
    %1236 = vmatpush1.msra.mxu0 %v1222
    %1237 = vmatprep.subr.mxu0 0.0
    %1238 = vmatpush1.msra.mxu0 %v1223
    %1239 = vmatprep.subr.mxu0 0.0
    %1240 = vmatpush1.msra.mxu0 %v1224
    %1241 = vmatprep.subr.mxu0 0.0
    %1242 = vmatpush1.msra.mxu0 0.0
    %1243 = vmatprep.subr.mxu0 0.0
    %1244 = vmatpush1.msra.mxu0 0.0
    %1245 = vmatprep.subr.mxu0 0.0
    %1246 = vmatpush1.msra.mxu0 0.0
    %1247 = vmatprep.subr.mxu0 0.0
    %1248 = vmatpush1.msra.mxu0 0.0
    %1249 = vmatprep.subr.mxu0 0.0
    %1250 = vmatpush1.msra.mxu0 0.0
    %1251 = vmatprep.subr.mxu0 0.0
    %1252 = vmatpush1.msra.mxu0 0.0
    %1253 = vmatprep.subr.mxu0 0.0
    %1254 = vmatpush1.msra.mxu0 0.0
    %1255 = vmatprep.subr.mxu0 0.0
    %1256 = vmatpush1.msra.mxu0 0.0
    %1257 = vmatprep.subr.mxu0 0.0
    %1258 = vmatpush1.msra.mxu0 0.0
    %1259 = vmatprep.subr.mxu0 0.0
    %1260 = vmatpush1.msra.mxu0 0.0
    %1261 = vmatprep.subr.mxu0 0.0
    %1262 = vmatpush1.msra.mxu0 0.0
    %1263 = vmatprep.subr.mxu0 0.0
    %1264 = vmatpush1.msra.mxu0 0.0
    %1265 = vmatprep.subr.mxu0 0.0
    %1266 = vmatpush1.msra.mxu0 0.0
    %1267 = vmatprep.subr.mxu0 0.0
    %1268 = vmatpush1.msra.mxu0 0.0
    %1269 = vmatprep.subr.mxu0 0.0
    %1270 = vmatpush1.msra.mxu0 0.0
    %1271 = vmatprep.subr.mxu0 0.0
    %1272 = vmatpush1.msra.mxu0 0.0
    %1273 = vmatprep.subr.mxu0 0.0
    %1274 = vmatpush1.msra.mxu0 0.0
    %1275 = vmatprep.subr.mxu0 0.0
    %1276 = vmatpush1.msra.mxu0 0.0
    %1277 = vmatprep.subr.mxu0 0.0
    %1278 = vmatpush1.msra.mxu0 0.0
    %1279 = vmatprep.subr.mxu0 0.0
    %1280 = vmatpush1.msra.mxu0 0.0
    %1281 = vmatprep.subr.mxu0 0.0
    %1282 = vmatpush1.msra.mxu0 0.0
    %1283 = vmatprep.subr.mxu0 0.0
    %1284 = vmatpush1.msra.mxu0 0.0
    %1285 = vmatprep.subr.mxu0 0.0
    %1286 = vmatpush1.msra.mxu0 0.0
    %1287 = vmatprep.subr.mxu0 0.0
    %1288 = vmatpush1.msra.mxu0 0.0
    %1289 = vmatprep.subr.mxu0 0.0
    %1290 = vmatpush1.msra.mxu0 0.0
    %1291 = vmatprep.subr.mxu0 0.0
    %1292 = vmatpush1.msra.mxu0 0.0
    %1293 = vmatprep.subr.mxu0 0.0
    %1294 = vmatpush1.msra.mxu0 0.0
    %1295 = vmatprep.subr.mxu0 0.0
    %1296 = vmatpush1.msra.mxu0 0.0
    %1297 = vmatprep.mubr.f32.mxu0 0.0
    %1298 = vmatmul.mubr.f32.gmra.mrb[0].mxu0 %v1140
    %v1299 = vpop.f32.mrb[0].mxu0
    %v1300 = vadd.f32 %v1231, %v1299
    %v1301 = vpop.f32.mrb[0].mxu0
    %1302 = vmatprep.mubr.f32.mxu0 0.0
    %1303 = vmatmul.mubr.f32.gmra.mrb[0].mxu0 %v1143
    %v1304 = vpop.f32.mrb[0].mxu0
    %v1305 = vadd.f32 %v1231, %v1304
    %v1306 = vpop.f32.mrb[0].mxu0
    %1307 = vdwg.mxu0
    %s1308 = scalar_lea.vmem %s1, 160
    %v1309 = vld [vmem:[%s1308] sm:$0xff]
    %v1310 = vld [vmem:[%s1308 + $0x8] sm:$0xff]
    %v1311 = vld [vmem:[%s1308 + $0x10] sm:$0xff]
    %v1312 = vld [vmem:[%s1308 + $0x18] sm:$0xff]
    %s1313 = scalar_lea.vmem [#allocation5], 5
    %v1314 = vld [vmem:[%s1313] sm:$0x1]
    %v1316 = vlaneseq
    %v1317 = vshrl.u32 %v1316, 7
    %v1318 = vsub.s32 0, %v1317
    %v1319 = vrot.slane %v1314, %v1318
    %1321 = vmatprep.subr.mxu0 0.0
    %1322 = vmatpush1.msra.mxu0 %v1309
    %1323 = vmatprep.subr.mxu0 0.0
    %1324 = vmatpush1.msra.mxu0 %v1310
    %1325 = vmatprep.subr.mxu0 0.0
    %1326 = vmatpush1.msra.mxu0 %v1311
    %1327 = vmatprep.subr.mxu0 0.0
    %1328 = vmatpush1.msra.mxu0 %v1312
    %1329 = vmatprep.subr.mxu0 0.0
    %1330 = vmatpush1.msra.mxu0 0.0
    %1331 = vmatprep.subr.mxu0 0.0
    %1332 = vmatpush1.msra.mxu0 0.0
    %1333 = vmatprep.subr.mxu0 0.0
    %1334 = vmatpush1.msra.mxu0 0.0
    %1335 = vmatprep.subr.mxu0 0.0
    %1336 = vmatpush1.msra.mxu0 0.0
    %1337 = vmatprep.subr.mxu0 0.0
    %1338 = vmatpush1.msra.mxu0 0.0
    %1339 = vmatprep.subr.mxu0 0.0
    %1340 = vmatpush1.msra.mxu0 0.0
    %1341 = vmatprep.subr.mxu0 0.0
    %1342 = vmatpush1.msra.mxu0 0.0
    %1343 = vmatprep.subr.mxu0 0.0
    %1344 = vmatpush1.msra.mxu0 0.0
    %1345 = vmatprep.subr.mxu0 0.0
    %1346 = vmatpush1.msra.mxu0 0.0
    %1347 = vmatprep.subr.mxu0 0.0
    %1348 = vmatpush1.msra.mxu0 0.0
    %1349 = vmatprep.subr.mxu0 0.0
    %1350 = vmatpush1.msra.mxu0 0.0
    %1351 = vmatprep.subr.mxu0 0.0
    %1352 = vmatpush1.msra.mxu0 0.0
    %1353 = vmatprep.subr.mxu0 0.0
    %1354 = vmatpush1.msra.mxu0 0.0
    %1355 = vmatprep.subr.mxu0 0.0
    %1356 = vmatpush1.msra.mxu0 0.0
    %1357 = vmatprep.subr.mxu0 0.0
    %1358 = vmatpush1.msra.mxu0 0.0
    %1359 = vmatprep.subr.mxu0 0.0
    %1360 = vmatpush1.msra.mxu0 0.0
    %1361 = vmatprep.subr.mxu0 0.0
    %1362 = vmatpush1.msra.mxu0 0.0
    %1363 = vmatprep.subr.mxu0 0.0
    %1364 = vmatpush1.msra.mxu0 0.0
    %1365 = vmatprep.subr.mxu0 0.0
    %1366 = vmatpush1.msra.mxu0 0.0
    %1367 = vmatprep.subr.mxu0 0.0
    %1368 = vmatpush1.msra.mxu0 0.0
    %1369 = vmatprep.subr.mxu0 0.0
    %1370 = vmatpush1.msra.mxu0 0.0
    %1371 = vmatprep.subr.mxu0 0.0
    %1372 = vmatpush1.msra.mxu0 0.0
    %1373 = vmatprep.subr.mxu0 0.0
    %1374 = vmatpush1.msra.mxu0 0.0
    %1375 = vmatprep.subr.mxu0 0.0
    %1376 = vmatpush1.msra.mxu0 0.0
    %1377 = vmatprep.subr.mxu0 0.0
    %1378 = vmatpush1.msra.mxu0 0.0
    %1379 = vmatprep.subr.mxu0 0.0
    %1380 = vmatpush1.msra.mxu0 0.0
    %1381 = vmatprep.subr.mxu0 0.0
    %1382 = vmatpush1.msra.mxu0 0.0
    %1383 = vmatprep.subr.mxu0 0.0
    %1384 = vmatpush1.msra.mxu0 0.0
    %1385 = vmatprep.mubr.f32.mxu0 0.0
    %1386 = vmatmul.mubr.f32.gmra.mrb[0].mxu0 %v1140
    %v1387 = vpop.f32.mrb[0].mxu0
    %v1388 = vadd.f32 %v1319, %v1387
    %v1389 = vpop.f32.mrb[0].mxu0
    %1390 = vmatprep.mubr.f32.mxu0 0.0
    %1391 = vmatmul.mubr.f32.gmra.mrb[0].mxu0 %v1143
    %v1392 = vpop.f32.mrb[0].mxu0
    %v1393 = vadd.f32 %v1319, %v1392
    %v1394 = vpop.f32.mrb[0].mxu0
    %1395 = vdwg.mxu0
    %v1397 = vsel %vm171, %v1212, 0
    %v1400 = vsel %vm171, %v1300, 0
    %1402 = vmatprep.subr.mxu0 0.0
    %1403 = vmatpush1.xpose.msra.mxu0 %v1400
    %1404 = vmatprep.subr.mxu0 0.0
    %1405 = vmatpush1.xpose.msra.mxu0 0.0
    %1406 = vmatprep.subr.mxu0 0.0
    %1407 = vmatpush1.xpose.msra.mxu0 0.0
    %1408 = vmatprep.subr.mxu0 0.0
    %1409 = vmatpush1.xpose.msra.mxu0 0.0
    %1410 = vmatprep.subr.mxu0 0.0
    %1411 = vmatpush1.xpose.msra.mxu0 0.0
    %1412 = vmatprep.subr.mxu0 0.0
    %1413 = vmatpush1.xpose.msra.mxu0 0.0
    %1414 = vmatprep.subr.mxu0 0.0
    %1415 = vmatpush1.xpose.msra.mxu0 0.0
    %1416 = vmatprep.subr.mxu0 0.0
    %1417 = vmatpush1.xpose.msra.mxu0 0.0
    %1418 = vmatprep.subr.mxu0 0.0
    %1419 = vmatpush1.xpose.msra.mxu0 0.0
    %1420 = vmatprep.subr.mxu0 0.0
    %1421 = vmatpush1.xpose.msra.mxu0 0.0
    %1422 = vmatprep.subr.mxu0 0.0
    %1423 = vmatpush1.xpose.msra.mxu0 0.0
    %1424 = vmatprep.subr.mxu0 0.0
    %1425 = vmatpush1.xpose.msra.mxu0 0.0
    %1426 = vmatprep.subr.mxu0 0.0
    %1427 = vmatpush1.xpose.msra.mxu0 0.0
    %1428 = vmatprep.subr.mxu0 0.0
    %1429 = vmatpush1.xpose.msra.mxu0 0.0
    %1430 = vmatprep.subr.mxu0 0.0
    %1431 = vmatpush1.xpose.msra.mxu0 0.0
    %1432 = vmatprep.subr.mxu0 0.0
    %1433 = vmatpush1.xpose.msra.mxu0 0.0
    %1434 = vmatprep.subr.mxu0 0.0
    %1435 = vmatpush1.xpose.msra.mxu0 0.0
    %1436 = vmatprep.subr.mxu0 0.0
    %1437 = vmatpush1.xpose.msra.mxu0 0.0
    %1438 = vmatprep.subr.mxu0 0.0
    %1439 = vmatpush1.xpose.msra.mxu0 0.0
    %1440 = vmatprep.subr.mxu0 0.0
    %1441 = vmatpush1.xpose.msra.mxu0 0.0
    %1442 = vmatprep.subr.mxu0 0.0
    %1443 = vmatpush1.xpose.msra.mxu0 0.0
    %1444 = vmatprep.subr.mxu0 0.0
    %1445 = vmatpush1.xpose.msra.mxu0 0.0
    %1446 = vmatprep.subr.mxu0 0.0
    %1447 = vmatpush1.xpose.msra.mxu0 0.0
    %1448 = vmatprep.subr.mxu0 0.0
    %1449 = vmatpush1.xpose.msra.mxu0 0.0
    %1450 = vmatprep.subr.mxu0 0.0
    %1451 = vmatpush1.xpose.msra.mxu0 0.0
    %1452 = vmatprep.subr.mxu0 0.0
    %1453 = vmatpush1.xpose.msra.mxu0 0.0
    %1454 = vmatprep.subr.mxu0 0.0
    %1455 = vmatpush1.xpose.msra.mxu0 0.0
    %1456 = vmatprep.subr.mxu0 0.0
    %1457 = vmatpush1.xpose.msra.mxu0 0.0
    %1458 = vmatprep.subr.mxu0 0.0
    %1459 = vmatpush1.xpose.msra.mxu0 0.0
    %1460 = vmatprep.subr.mxu0 0.0
    %1461 = vmatpush1.xpose.msra.mxu0 0.0
    %1462 = vmatprep.subr.mxu0 0.0
    %1463 = vmatpush1.xpose.msra.mxu0 0.0
    %1464 = vmatprep.subr.mxu0 0.0
    %1465 = vmatpush1.xpose.msra.mxu0 0.0
    %1466 = vmatprep.mubr.f32.mxu0 0.0
    %1467 = vmatmul.mubr.f32.gmra.mrb[0].mxu0 %v1397
    %v1468 = vpop.f32.mrb[0].mxu0
    %v1469 = vadd.f32 %v159, %v1468
    %v1470 = vpop.f32.mrb[0].mxu0
    %1471 = vdwg.mxu0
    %v1473 = vsel %vm171, %v1217, 0
    %v1476 = vsel %vm171, %v1305, 0
    %1478 = vmatprep.subr.mxu0 0.0
    %1479 = vmatpush1.xpose.msra.mxu0 %v1476
    %1480 = vmatprep.subr.mxu0 0.0
    %1481 = vmatpush1.xpose.msra.mxu0 0.0
    %1482 = vmatprep.subr.mxu0 0.0
    %1483 = vmatpush1.xpose.msra.mxu0 0.0
    %1484 = vmatprep.subr.mxu0 0.0
    %1485 = vmatpush1.xpose.msra.mxu0 0.0
    %1486 = vmatprep.subr.mxu0 0.0
    %1487 = vmatpush1.xpose.msra.mxu0 0.0
    %1488 = vmatprep.subr.mxu0 0.0
    %1489 = vmatpush1.xpose.msra.mxu0 0.0
    %1490 = vmatprep.subr.mxu0 0.0
    %1491 = vmatpush1.xpose.msra.mxu0 0.0
    %1492 = vmatprep.subr.mxu0 0.0
    %1493 = vmatpush1.xpose.msra.mxu0 0.0
    %1494 = vmatprep.subr.mxu0 0.0
    %1495 = vmatpush1.xpose.msra.mxu0 0.0
    %1496 = vmatprep.subr.mxu0 0.0
    %1497 = vmatpush1.xpose.msra.mxu0 0.0
    %1498 = vmatprep.subr.mxu0 0.0
    %1499 = vmatpush1.xpose.msra.mxu0 0.0
    %1500 = vmatprep.subr.mxu0 0.0
    %1501 = vmatpush1.xpose.msra.mxu0 0.0
    %1502 = vmatprep.subr.mxu0 0.0
    %1503 = vmatpush1.xpose.msra.mxu0 0.0
    %1504 = vmatprep.subr.mxu0 0.0
    %1505 = vmatpush1.xpose.msra.mxu0 0.0
    %1506 = vmatprep.subr.mxu0 0.0
    %1507 = vmatpush1.xpose.msra.mxu0 0.0
    %1508 = vmatprep.subr.mxu0 0.0
    %1509 = vmatpush1.xpose.msra.mxu0 0.0
    %1510 = vmatprep.subr.mxu0 0.0
    %1511 = vmatpush1.xpose.msra.mxu0 0.0
    %1512 = vmatprep.subr.mxu0 0.0
    %1513 = vmatpush1.xpose.msra.mxu0 0.0
    %1514 = vmatprep.subr.mxu0 0.0
    %1515 = vmatpush1.xpose.msra.mxu0 0.0
    %1516 = vmatprep.subr.mxu0 0.0
    %1517 = vmatpush1.xpose.msra.mxu0 0.0
    %1518 = vmatprep.subr.mxu0 0.0
    %1519 = vmatpush1.xpose.msra.mxu0 0.0
    %1520 = vmatprep.subr.mxu0 0.0
    %1521 = vmatpush1.xpose.msra.mxu0 0.0
    %1522 = vmatprep.subr.mxu0 0.0
    %1523 = vmatpush1.xpose.msra.mxu0 0.0
    %1524 = vmatprep.subr.mxu0 0.0
    %1525 = vmatpush1.xpose.msra.mxu0 0.0
    %1526 = vmatprep.subr.mxu0 0.0
    %1527 = vmatpush1.xpose.msra.mxu0 0.0
    %1528 = vmatprep.subr.mxu0 0.0
    %1529 = vmatpush1.xpose.msra.mxu0 0.0
    %1530 = vmatprep.subr.mxu0 0.0
    %1531 = vmatpush1.xpose.msra.mxu0 0.0
    %1532 = vmatprep.subr.mxu0 0.0
    %1533 = vmatpush1.xpose.msra.mxu0 0.0
    %1534 = vmatprep.subr.mxu0 0.0
    %1535 = vmatpush1.xpose.msra.mxu0 0.0
    %1536 = vmatprep.subr.mxu0 0.0
    %1537 = vmatpush1.xpose.msra.mxu0 0.0
    %1538 = vmatprep.subr.mxu0 0.0
    %1539 = vmatpush1.xpose.msra.mxu0 0.0
    %1540 = vmatprep.subr.mxu0 0.0
    %1541 = vmatpush1.xpose.msra.mxu0 0.0
    %1542 = vmatprep.mubr.f32.mxu0 0.0
    %1543 = vmatmul.mubr.f32.gmra.mrb[0].mxu0 %v1473
    %v1544 = vpop.f32.mrb[0].mxu0
    %v1545 = vadd.f32 %v159, %v1544
    %v1546 = vpop.f32.mrb[0].mxu0
    %1547 = vdwg.mxu0
    %v1548 = vsel %vm581, %v1469, -inf
    %1549 = vmax.xlane.f32.xlu0 %v1548
    %v1550 = vpop.xlane.xlu0 %1549
    %v1551 = vsel %vm581, %v1545, -inf
    %1552 = vmax.xlane.f32.xlu0 %v1551
    %v1553 = vpop.xlane.xlu0 %1552
    %v1554 = vsub.f32 %v1469, %v1550
    %v1555 = vsub.f32 %v1545, %v1553
    %v1556 = vmul.f32 %v1554, 1.442695
    %v1557 = vpow.pop %v1556
    %v1558 = vmul.f32 %v1555, 1.442695
    %v1559 = vpow.pop %v1558
    %v1560 = vsel %vm581, %v1557, 0.0
    %1561 = vadd.xlane.f32.xlu0 %v1560
    %v1562 = vpop.xlane.xlu0 %1561
    %v1563 = vsel %vm581, %v1559, 0.0
    %1564 = vadd.xlane.f32.xlu0 %v1563
    %v1565 = vpop.xlane.xlu0 %1564
    %v1566 = vrcp.pop %v1562
    %v1567 = vrcp.pop %v1565
    %v1568 = vmul.f32 %v1557, %v1566
    %v1569 = vmul.f32 %v1559, %v1567
    %v1571 = vsel %vm581, %v1568, 0
    %1573 = vmatprep.subr.mxu0 0.0
    %1574 = vmatpush1.msra.mxu0 %v1388
    %1575 = vmatprep.subr.mxu0 0.0
    %1576 = vmatpush1.msra.mxu0 0.0
    %1577 = vmatprep.subr.mxu0 0.0
    %1578 = vmatpush1.msra.mxu0 0.0
    %1579 = vmatprep.subr.mxu0 0.0
    %1580 = vmatpush1.msra.mxu0 0.0
    %1581 = vmatprep.subr.mxu0 0.0
    %1582 = vmatpush1.msra.mxu0 0.0
    %1583 = vmatprep.subr.mxu0 0.0
    %1584 = vmatpush1.msra.mxu0 0.0
    %1585 = vmatprep.subr.mxu0 0.0
    %1586 = vmatpush1.msra.mxu0 0.0
    %1587 = vmatprep.subr.mxu0 0.0
    %1588 = vmatpush1.msra.mxu0 0.0
    %1589 = vmatprep.subr.mxu0 0.0
    %1590 = vmatpush1.msra.mxu0 0.0
    %1591 = vmatprep.subr.mxu0 0.0
    %1592 = vmatpush1.msra.mxu0 0.0
    %1593 = vmatprep.subr.mxu0 0.0
    %1594 = vmatpush1.msra.mxu0 0.0
    %1595 = vmatprep.subr.mxu0 0.0
    %1596 = vmatpush1.msra.mxu0 0.0
    %1597 = vmatprep.subr.mxu0 0.0
    %1598 = vmatpush1.msra.mxu0 0.0
    %1599 = vmatprep.subr.mxu0 0.0
    %1600 = vmatpush1.msra.mxu0 0.0
    %1601 = vmatprep.subr.mxu0 0.0
    %1602 = vmatpush1.msra.mxu0 0.0
    %1603 = vmatprep.subr.mxu0 0.0
    %1604 = vmatpush1.msra.mxu0 0.0
    %1605 = vmatprep.subr.mxu0 0.0
    %1606 = vmatpush1.msra.mxu0 0.0
    %1607 = vmatprep.subr.mxu0 0.0
    %1608 = vmatpush1.msra.mxu0 0.0
    %1609 = vmatprep.subr.mxu0 0.0
    %1610 = vmatpush1.msra.mxu0 0.0
    %1611 = vmatprep.subr.mxu0 0.0
    %1612 = vmatpush1.msra.mxu0 0.0
    %1613 = vmatprep.subr.mxu0 0.0
    %1614 = vmatpush1.msra.mxu0 0.0
    %1615 = vmatprep.subr.mxu0 0.0
    %1616 = vmatpush1.msra.mxu0 0.0
    %1617 = vmatprep.subr.mxu0 0.0
    %1618 = vmatpush1.msra.mxu0 0.0
    %1619 = vmatprep.subr.mxu0 0.0
    %1620 = vmatpush1.msra.mxu0 0.0
    %1621 = vmatprep.subr.mxu0 0.0
    %1622 = vmatpush1.msra.mxu0 0.0
    %1623 = vmatprep.subr.mxu0 0.0
    %1624 = vmatpush1.msra.mxu0 0.0
    %1625 = vmatprep.subr.mxu0 0.0
    %1626 = vmatpush1.msra.mxu0 0.0
    %1627 = vmatprep.subr.mxu0 0.0
    %1628 = vmatpush1.msra.mxu0 0.0
    %1629 = vmatprep.subr.mxu0 0.0
    %1630 = vmatpush1.msra.mxu0 0.0
    %1631 = vmatprep.subr.mxu0 0.0
    %1632 = vmatpush1.msra.mxu0 0.0
    %1633 = vmatprep.subr.mxu0 0.0
    %1634 = vmatpush1.msra.mxu0 0.0
    %1635 = vmatprep.subr.mxu0 0.0
    %1636 = vmatpush1.msra.mxu0 0.0
    %1637 = vmatprep.mubr.f32.mxu0 0.0
    %1638 = vmatmul.mubr.f32.gmra.mrb[0].mxu0 %v1571
    %v1639 = vpop.f32.mrb[0].mxu0
    %v1640 = vadd.f32 0.0, %v1639
    %v1641 = vpop.f32.mrb[0].mxu0
    %1642 = vdwg.mxu0
    %v1644 = vsel %vm581, %v1569, 0
    %1646 = vmatprep.subr.mxu0 0.0
    %1647 = vmatpush1.msra.mxu0 %v1393
    %1648 = vmatprep.subr.mxu0 0.0
    %1649 = vmatpush1.msra.mxu0 0.0
    %1650 = vmatprep.subr.mxu0 0.0
    %1651 = vmatpush1.msra.mxu0 0.0
    %1652 = vmatprep.subr.mxu0 0.0
    %1653 = vmatpush1.msra.mxu0 0.0
    %1654 = vmatprep.subr.mxu0 0.0
    %1655 = vmatpush1.msra.mxu0 0.0
    %1656 = vmatprep.subr.mxu0 0.0
    %1657 = vmatpush1.msra.mxu0 0.0
    %1658 = vmatprep.subr.mxu0 0.0
    %1659 = vmatpush1.msra.mxu0 0.0
    %1660 = vmatprep.subr.mxu0 0.0
    %1661 = vmatpush1.msra.mxu0 0.0
    %1662 = vmatprep.subr.mxu0 0.0
    %1663 = vmatpush1.msra.mxu0 0.0
    %1664 = vmatprep.subr.mxu0 0.0
    %1665 = vmatpush1.msra.mxu0 0.0
    %1666 = vmatprep.subr.mxu0 0.0
    %1667 = vmatpush1.msra.mxu0 0.0
    %1668 = vmatprep.subr.mxu0 0.0
    %1669 = vmatpush1.msra.mxu0 0.0
    %1670 = vmatprep.subr.mxu0 0.0
    %1671 = vmatpush1.msra.mxu0 0.0
    %1672 = vmatprep.subr.mxu0 0.0
    %1673 = vmatpush1.msra.mxu0 0.0
    %1674 = vmatprep.subr.mxu0 0.0
    %1675 = vmatpush1.msra.mxu0 0.0
    %1676 = vmatprep.subr.mxu0 0.0
    %1677 = vmatpush1.msra.mxu0 0.0
    %1678 = vmatprep.subr.mxu0 0.0
    %1679 = vmatpush1.msra.mxu0 0.0
    %1680 = vmatprep.subr.mxu0 0.0
    %1681 = vmatpush1.msra.mxu0 0.0
    %1682 = vmatprep.subr.mxu0 0.0
    %1683 = vmatpush1.msra.mxu0 0.0
    %1684 = vmatprep.subr.mxu0 0.0
    %1685 = vmatpush1.msra.mxu0 0.0
    %1686 = vmatprep.subr.mxu0 0.0
    %1687 = vmatpush1.msra.mxu0 0.0
    %1688 = vmatprep.subr.mxu0 0.0
    %1689 = vmatpush1.msra.mxu0 0.0
    %1690 = vmatprep.subr.mxu0 0.0
    %1691 = vmatpush1.msra.mxu0 0.0
    %1692 = vmatprep.subr.mxu0 0.0
    %1693 = vmatpush1.msra.mxu0 0.0
    %1694 = vmatprep.subr.mxu0 0.0
    %1695 = vmatpush1.msra.mxu0 0.0
    %1696 = vmatprep.subr.mxu0 0.0
    %1697 = vmatpush1.msra.mxu0 0.0
    %1698 = vmatprep.subr.mxu0 0.0
    %1699 = vmatpush1.msra.mxu0 0.0
    %1700 = vmatprep.subr.mxu0 0.0
    %1701 = vmatpush1.msra.mxu0 0.0
    %1702 = vmatprep.subr.mxu0 0.0
    %1703 = vmatpush1.msra.mxu0 0.0
    %1704 = vmatprep.subr.mxu0 0.0
    %1705 = vmatpush1.msra.mxu0 0.0
    %1706 = vmatprep.subr.mxu0 0.0
    %1707 = vmatpush1.msra.mxu0 0.0
    %1708 = vmatprep.subr.mxu0 0.0
    %1709 = vmatpush1.msra.mxu0 0.0
    %1710 = vmatprep.mubr.f32.mxu0 0.0
    %1711 = vmatmul.mubr.f32.gmra.mrb[0].mxu0 %v1644
    %v1712 = vpop.f32.mrb[0].mxu0
    %v1713 = vadd.f32 0.0, %v1712
    %v1714 = vpop.f32.mrb[0].mxu0
    %1715 = vdwg.mxu0
    %s1716 = scalar_lea.vmem [#allocation7], 32
    %v1717 = vld [vmem:[%s1716] sm:$0xff]
    %v1718 = vld [vmem:[%s1716 + $0x8] sm:$0xff]
    %v1719 = vld [vmem:[%s1716 + $0x10] sm:$0xff]
    %v1720 = vld [vmem:[%s1716 + $0x18] sm:$0xff]
    %s1721 = scalar_lea.vmem %s4, 1
    %v1722 = vld [vmem:[%s1721] sm:$0x1]
    %v1724 = vlaneseq
    %v1725 = vshrl.u32 %v1724, 7
    %v1726 = vsub.s32 0, %v1725
    %v1727 = vrot.slane %v1722, %v1726
    %v1730 = vsel %vm171, %v1640, 0
    %v1733 = vsel %vm171, %v1713, 0
    %1735 = vmatprep.subr.mxu0 0.0
    %1736 = vmatpush1.msra.mxu0 %v1717
    %1737 = vmatprep.subr.mxu0 0.0
    %1738 = vmatpush1.msra.mxu0 %v1718
    %1739 = vmatprep.subr.mxu0 0.0
    %1740 = vmatpush1.msra.mxu0 %v1719
    %1741 = vmatprep.subr.mxu0 0.0
    %1742 = vmatpush1.msra.mxu0 %v1720
    %1743 = vmatprep.subr.mxu0 0.0
    %1744 = vmatpush1.msra.mxu0 0.0
    %1745 = vmatprep.subr.mxu0 0.0
    %1746 = vmatpush1.msra.mxu0 0.0
    %1747 = vmatprep.subr.mxu0 0.0
    %1748 = vmatpush1.msra.mxu0 0.0
    %1749 = vmatprep.subr.mxu0 0.0
    %1750 = vmatpush1.msra.mxu0 0.0
    %1751 = vmatprep.subr.mxu0 0.0
    %1752 = vmatpush1.msra.mxu0 0.0
    %1753 = vmatprep.subr.mxu0 0.0
    %1754 = vmatpush1.msra.mxu0 0.0
    %1755 = vmatprep.subr.mxu0 0.0
    %1756 = vmatpush1.msra.mxu0 0.0
    %1757 = vmatprep.subr.mxu0 0.0
    %1758 = vmatpush1.msra.mxu0 0.0
    %1759 = vmatprep.subr.mxu0 0.0
    %1760 = vmatpush1.msra.mxu0 0.0
    %1761 = vmatprep.subr.mxu0 0.0
    %1762 = vmatpush1.msra.mxu0 0.0
    %1763 = vmatprep.subr.mxu0 0.0
    %1764 = vmatpush1.msra.mxu0 0.0
    %1765 = vmatprep.subr.mxu0 0.0
    %1766 = vmatpush1.msra.mxu0 0.0
    %1767 = vmatprep.subr.mxu0 0.0
    %1768 = vmatpush1.msra.mxu0 0.0
    %1769 = vmatprep.subr.mxu0 0.0
    %1770 = vmatpush1.msra.mxu0 0.0
    %1771 = vmatprep.subr.mxu0 0.0
    %1772 = vmatpush1.msra.mxu0 0.0
    %1773 = vmatprep.subr.mxu0 0.0
    %1774 = vmatpush1.msra.mxu0 0.0
    %1775 = vmatprep.subr.mxu0 0.0
    %1776 = vmatpush1.msra.mxu0 0.0
    %1777 = vmatprep.subr.mxu0 0.0
    %1778 = vmatpush1.msra.mxu0 0.0
    %1779 = vmatprep.subr.mxu0 0.0
    %1780 = vmatpush1.msra.mxu0 0.0
    %1781 = vmatprep.subr.mxu0 0.0
    %1782 = vmatpush1.msra.mxu0 0.0
    %1783 = vmatprep.subr.mxu0 0.0
    %1784 = vmatpush1.msra.mxu0 0.0
    %1785 = vmatprep.subr.mxu0 0.0
    %1786 = vmatpush1.msra.mxu0 0.0
    %1787 = vmatprep.subr.mxu0 0.0
    %1788 = vmatpush1.msra.mxu0 0.0
    %1789 = vmatprep.subr.mxu0 0.0
    %1790 = vmatpush1.msra.mxu0 0.0
    %1791 = vmatprep.subr.mxu0 0.0
    %1792 = vmatpush1.msra.mxu0 0.0
    %1793 = vmatprep.subr.mxu0 0.0
    %1794 = vmatpush1.msra.mxu0 0.0
    %1795 = vmatprep.subr.mxu0 0.0
    %1796 = vmatpush1.msra.mxu0 0.0
    %1797 = vmatprep.subr.mxu0 0.0
    %1798 = vmatpush1.msra.mxu0 0.0
    %1799 = vmatprep.mubr.f32.mxu0 0.0
    %1800 = vmatmul.mubr.f32.gmra.mrb[0].mxu0 %v1730
    %v1801 = vpop.f32.mrb[0].mxu0
    %v1802 = vadd.f32 %v1727, %v1801
    %v1803 = vpop.f32.mrb[0].mxu0
    %1804 = vmatprep.mubr.f32.mxu0 0.0
    %1805 = vmatmul.mubr.f32.gmra.mrb[0].mxu0 %v1733
    %v1806 = vpop.f32.mrb[0].mxu0
    %v1807 = vadd.f32 %v1727, %v1806
    %v1808 = vpop.f32.mrb[0].mxu0
    %1809 = vdwg.mxu0
    %v1810 = vadd.f32 %v1124, %v1802
    %v1811 = vadd.f32 %v1125, %v1807
    %s1812 = scalar_lea.vmem [#allocation8], 1
    %v1813 = vld [vmem:[%s1812] sm:$0x1]
    %s1814 = scalar_lea.vmem [#allocation10], 1
    %v1815 = vld [vmem:[%s1814] sm:$0x1]
    %v1816 = vsel %vm171, %v1810, 0.0
    %1817 = vadd.xlane.f32.xlu0 %v1816
    %v1818 = vpop.xlane.xlu0 %1817
    %v1819 = vsel %vm171, %v1811, 0.0
    %1820 = vadd.xlane.f32.xlu0 %v1819
    %v1821 = vpop.xlane.xlu0 %1820
    %v1822 = vmul.f32 %v1818, %v852
    %v1823 = vmul.f32 %v1821, %v852
    %v1824 = vsub.f32 %v1810, %v1822
    %v1825 = vsub.f32 %v1811, %v1823
    %v1826 = vmul.f32 %v1824, %v1824
    %v1827 = vmul.f32 %v1825, %v1825
    %v1828 = vsel %vm171, %v1826, 0.0
    %1829 = vadd.xlane.f32.xlu0 %v1828
    %v1830 = vpop.xlane.xlu0 %1829
    %v1831 = vsel %vm171, %v1827, 0.0
    %1832 = vadd.xlane.f32.xlu0 %v1831
    %v1833 = vpop.xlane.xlu0 %1832
    %v1834 = vmul.f32 %v1830, %v852
    %v1835 = vmul.f32 %v1833, %v852
    %v1836 = vadd.f32 %v1834, 1e-05
    %v1837 = vadd.f32 %v1835, 1e-05
    %v1838 = vrsqrt.pop %v1836
    %v1839 = vrsqrt.pop %v1837
    %v1840 = vmul.f32 %v1824, %v1838
    %v1841 = vmul.f32 %v1825, %v1839
    %v1843 = vlaneseq
    %v1844 = vshrl.u32 %v1843, 7
    %v1845 = vsub.s32 0, %v1844
    %v1846 = vrot.slane %v1813, %v1845
    %v1848 = vmul.f32 %v1840, %v1846
    %v1849 = vmul.f32 %v1841, %v1846
    %v1851 = vlaneseq
    %v1852 = vshrl.u32 %v1851, 7
    %v1853 = vsub.s32 0, %v1852
    %v1854 = vrot.slane %v1815, %v1853
    %v1856 = vadd.f32 %v1848, %v1854
    %v1857 = vadd.f32 %v1849, %v1854
    %s1858 = scalar_lea.vmem [#allocation11], 32
    %v1859 = vld [vmem:[%s1858] sm:$0xff]
    %v1860 = vld [vmem:[%s1858 + $0x8] sm:$0xff]
    %v1861 = vld [vmem:[%s1858 + $0x10] sm:$0xff]
    %v1862 = vld [vmem:[%s1858 + $0x18] sm:$0xff]
    %s1863 = scalar_lea.vmem [#allocation13], 1
    %v1864 = vld [vmem:[%s1863] sm:$0x1]
    %v1866 = vlaneseq
    %v1867 = vshrl.u32 %v1866, 7
    %v1868 = vsub.s32 0, %v1867
    %v1869 = vrot.slane %v1864, %v1868
    %v1872 = vsel %vm171, %v1856, 0
    %v1875 = vsel %vm171, %v1857, 0
    %1877 = vmatprep.subr.mxu0 0.0
    %1878 = vmatpush1.msra.mxu0 %v1859
    %1879 = vmatprep.subr.mxu0 0.0
    %1880 = vmatpush1.msra.mxu0 %v1860
    %1881 = vmatprep.subr.mxu0 0.0
    %1882 = vmatpush1.msra.mxu0 %v1861
    %1883 = vmatprep.subr.mxu0 0.0
    %1884 = vmatpush1.msra.mxu0 %v1862
    %1885 = vmatprep.subr.mxu0 0.0
    %1886 = vmatpush1.msra.mxu0 0.0
    %1887 = vmatprep.subr.mxu0 0.0
    %1888 = vmatpush1.msra.mxu0 0.0
    %1889 = vmatprep.subr.mxu0 0.0
    %1890 = vmatpush1.msra.mxu0 0.0
    %1891 = vmatprep.subr.mxu0 0.0
    %1892 = vmatpush1.msra.mxu0 0.0
    %1893 = vmatprep.subr.mxu0 0.0
    %1894 = vmatpush1.msra.mxu0 0.0
    %1895 = vmatprep.subr.mxu0 0.0
    %1896 = vmatpush1.msra.mxu0 0.0
    %1897 = vmatprep.subr.mxu0 0.0
    %1898 = vmatpush1.msra.mxu0 0.0
    %1899 = vmatprep.subr.mxu0 0.0
    %1900 = vmatpush1.msra.mxu0 0.0
    %1901 = vmatprep.subr.mxu0 0.0
    %1902 = vmatpush1.msra.mxu0 0.0
    %1903 = vmatprep.subr.mxu0 0.0
    %1904 = vmatpush1.msra.mxu0 0.0
    %1905 = vmatprep.subr.mxu0 0.0
    %1906 = vmatpush1.msra.mxu0 0.0
    %1907 = vmatprep.subr.mxu0 0.0
    %1908 = vmatpush1.msra.mxu0 0.0
    %1909 = vmatprep.subr.mxu0 0.0
    %1910 = vmatpush1.msra.mxu0 0.0
    %1911 = vmatprep.subr.mxu0 0.0
    %1912 = vmatpush1.msra.mxu0 0.0
    %1913 = vmatprep.subr.mxu0 0.0
    %1914 = vmatpush1.msra.mxu0 0.0
    %1915 = vmatprep.subr.mxu0 0.0
    %1916 = vmatpush1.msra.mxu0 0.0
    %1917 = vmatprep.subr.mxu0 0.0
    %1918 = vmatpush1.msra.mxu0 0.0
    %1919 = vmatprep.subr.mxu0 0.0
    %1920 = vmatpush1.msra.mxu0 0.0
    %1921 = vmatprep.subr.mxu0 0.0
    %1922 = vmatpush1.msra.mxu0 0.0
    %1923 = vmatprep.subr.mxu0 0.0
    %1924 = vmatpush1.msra.mxu0 0.0
    %1925 = vmatprep.subr.mxu0 0.0
    %1926 = vmatpush1.msra.mxu0 0.0
    %1927 = vmatprep.subr.mxu0 0.0
    %1928 = vmatpush1.msra.mxu0 0.0
    %1929 = vmatprep.subr.mxu0 0.0
    %1930 = vmatpush1.msra.mxu0 0.0
    %1931 = vmatprep.subr.mxu0 0.0
    %1932 = vmatpush1.msra.mxu0 0.0
    %1933 = vmatprep.subr.mxu0 0.0
    %1934 = vmatpush1.msra.mxu0 0.0
    %1935 = vmatprep.subr.mxu0 0.0
    %1936 = vmatpush1.msra.mxu0 0.0
    %1937 = vmatprep.subr.mxu0 0.0
    %1938 = vmatpush1.msra.mxu0 0.0
    %1939 = vmatprep.subr.mxu0 0.0
    %1940 = vmatpush1.msra.mxu0 0.0
    %1941 = vmatprep.mubr.f32.mxu0 0.0
    %1942 = vmatmul.mubr.f32.gmra.mrb[0].mxu0 %v1872
    %v1943 = vpop.f32.mrb[0].mxu0
    %v1944 = vadd.f32 %v1869, %v1943
    %v1945 = vpop.f32.mrb[0].mxu0
    %1946 = vmatprep.mubr.f32.mxu0 0.0
    %1947 = vmatmul.mubr.f32.gmra.mrb[0].mxu0 %v1875
    %v1948 = vpop.f32.mrb[0].mxu0
    %v1949 = vadd.f32 %v1869, %v1948
    %v1950 = vpop.f32.mrb[0].mxu0
    %1951 = vdwg.mxu0
    %v1952 = vmax.f32 %v1944, 0.0
    %v1953 = vmax.f32 %v1949, 0.0
    %s1954 = scalar_lea.vmem %s9, 64
    %v1955 = vld [vmem:[%s1954] sm:$0xff]
    %v1956 = vld [vmem:[%s1954 + $0x8] sm:$0xff]
    %v1957 = vld [vmem:[%s1954 + $0x10] sm:$0xff]
    %v1958 = vld [vmem:[%s1954 + $0x18] sm:$0xff]
    %v1959 = vld [vmem:[%s1954 + $0x20] sm:$0xff]
    %v1960 = vld [vmem:[%s1954 + $0x28] sm:$0xff]
    %v1961 = vld [vmem:[%s1954 + $0x30] sm:$0xff]
    %v1962 = vld [vmem:[%s1954 + $0x38] sm:$0xff]
    %s1963 = scalar_lea.vmem %s10, 1
    %v1964 = vld [vmem:[%s1963] sm:$0x1]
    %v1966 = vlaneseq
    %v1967 = vshrl.u32 %v1966, 7
    %v1968 = vsub.s32 0, %v1967
    %v1969 = vrot.slane %v1964, %v1968
    %v1972 = vsel %vm998, %v1952, 0
    %v1975 = vsel %vm998, %v1953, 0
    %1977 = vmatprep.subr.mxu0 0.0
    %1978 = vmatpush1.msra.mxu0 %v1955
    %1979 = vmatprep.subr.mxu0 0.0
    %1980 = vmatpush1.msra.mxu0 %v1956
    %1981 = vmatprep.subr.mxu0 0.0
    %1982 = vmatpush1.msra.mxu0 %v1957
    %1983 = vmatprep.subr.mxu0 0.0
    %1984 = vmatpush1.msra.mxu0 %v1958
    %1985 = vmatprep.subr.mxu0 0.0
    %1986 = vmatpush1.msra.mxu0 %v1959
    %1987 = vmatprep.subr.mxu0 0.0
    %1988 = vmatpush1.msra.mxu0 %v1960
    %1989 = vmatprep.subr.mxu0 0.0
    %1990 = vmatpush1.msra.mxu0 %v1961
    %1991 = vmatprep.subr.mxu0 0.0
    %1992 = vmatpush1.msra.mxu0 %v1962
    %1993 = vmatprep.subr.mxu0 0.0
    %1994 = vmatpush1.msra.mxu0 0.0
    %1995 = vmatprep.subr.mxu0 0.0
    %1996 = vmatpush1.msra.mxu0 0.0
    %1997 = vmatprep.subr.mxu0 0.0
    %1998 = vmatpush1.msra.mxu0 0.0
    %1999 = vmatprep.subr.mxu0 0.0
    %2000 = vmatpush1.msra.mxu0 0.0
    %2001 = vmatprep.subr.mxu0 0.0
    %2002 = vmatpush1.msra.mxu0 0.0
    %2003 = vmatprep.subr.mxu0 0.0
    %2004 = vmatpush1.msra.mxu0 0.0
    %2005 = vmatprep.subr.mxu0 0.0
    %2006 = vmatpush1.msra.mxu0 0.0
    %2007 = vmatprep.subr.mxu0 0.0
    %2008 = vmatpush1.msra.mxu0 0.0
    %2009 = vmatprep.subr.mxu0 0.0
    %2010 = vmatpush1.msra.mxu0 0.0
    %2011 = vmatprep.subr.mxu0 0.0
    %2012 = vmatpush1.msra.mxu0 0.0
    %2013 = vmatprep.subr.mxu0 0.0
    %2014 = vmatpush1.msra.mxu0 0.0
    %2015 = vmatprep.subr.mxu0 0.0
    %2016 = vmatpush1.msra.mxu0 0.0
    %2017 = vmatprep.subr.mxu0 0.0
    %2018 = vmatpush1.msra.mxu0 0.0
    %2019 = vmatprep.subr.mxu0 0.0
    %2020 = vmatpush1.msra.mxu0 0.0
    %2021 = vmatprep.subr.mxu0 0.0
    %2022 = vmatpush1.msra.mxu0 0.0
    %2023 = vmatprep.subr.mxu0 0.0
    %2024 = vmatpush1.msra.mxu0 0.0
    %2025 = vmatprep.subr.mxu0 0.0
    %2026 = vmatpush1.msra.mxu0 0.0
    %2027 = vmatprep.subr.mxu0 0.0
    %2028 = vmatpush1.msra.mxu0 0.0
    %2029 = vmatprep.subr.mxu0 0.0
    %2030 = vmatpush1.msra.mxu0 0.0
    %2031 = vmatprep.subr.mxu0 0.0
    %2032 = vmatpush1.msra.mxu0 0.0
    %2033 = vmatprep.subr.mxu0 0.0
    %2034 = vmatpush1.msra.mxu0 0.0
    %2035 = vmatprep.subr.mxu0 0.0
    %2036 = vmatpush1.msra.mxu0 0.0
    %2037 = vmatprep.subr.mxu0 0.0
    %2038 = vmatpush1.msra.mxu0 0.0
    %2039 = vmatprep.subr.mxu0 0.0
    %2040 = vmatpush1.msra.mxu0 0.0
    %2041 = vmatprep.mubr.f32.mxu0 0.0
    %2042 = vmatmul.mubr.f32.gmra.mrb[0].mxu0 %v1972
    %v2043 = vpop.f32.mrb[0].mxu0
    %v2044 = vadd.f32 %v1969, %v2043
    %v2045 = vpop.f32.mrb[0].mxu0
    %2046 = vmatprep.mubr.f32.mxu0 0.0
    %2047 = vmatmul.mubr.f32.gmra.mrb[0].mxu0 %v1975
    %v2048 = vpop.f32.mrb[0].mxu0
    %v2049 = vadd.f32 %v1969, %v2048
    %v2050 = vpop.f32.mrb[0].mxu0
    %2051 = vdwg.mxu0
    %v2052 = vadd.f32 %v1856, %v2044
    %v2053 = vadd.f32 %v1857, %v2049
    %s2054 = scalar_lea.vmem %s11, 1
    %v2055 = vld [vmem:[%s2054] sm:$0x1]
    %s2056 = scalar_lea.vmem %s12, 1
    %v2057 = vld [vmem:[%s2056] sm:$0x1]
    %v2058 = vsel %vm171, %v2052, 0.0
    %2059 = vadd.xlane.f32.xlu0 %v2058
    %v2060 = vpop.xlane.xlu0 %2059
    %v2061 = vsel %vm171, %v2053, 0.0
    %2062 = vadd.xlane.f32.xlu0 %v2061
    %v2063 = vpop.xlane.xlu0 %2062
    %v2064 = vmul.f32 %v2060, %v852
    %v2065 = vmul.f32 %v2063, %v852
    %v2066 = vsub.f32 %v2052, %v2064
    %v2067 = vsub.f32 %v2053, %v2065
    %v2068 = vmul.f32 %v2066, %v2066
    %v2069 = vmul.f32 %v2067, %v2067
    %v2070 = vsel %vm171, %v2068, 0.0
    %2071 = vadd.xlane.f32.xlu0 %v2070
    %v2072 = vpop.xlane.xlu0 %2071
    %v2073 = vsel %vm171, %v2069, 0.0
    %2074 = vadd.xlane.f32.xlu0 %v2073
    %v2075 = vpop.xlane.xlu0 %2074
    %v2076 = vmul.f32 %v2072, %v852
    %v2077 = vmul.f32 %v2075, %v852
    %v2078 = vadd.f32 %v2076, 1e-05
    %v2079 = vadd.f32 %v2077, 1e-05
    %v2080 = vrsqrt.pop %v2078
    %v2081 = vrsqrt.pop %v2079
    %v2082 = vmul.f32 %v2066, %v2080
    %v2083 = vmul.f32 %v2067, %v2081
    %v2085 = vlaneseq
    %v2086 = vshrl.u32 %v2085, 7
    %v2087 = vsub.s32 0, %v2086
    %v2088 = vrot.slane %v2055, %v2087
    %v2090 = vmul.f32 %v2082, %v2088
    %v2091 = vmul.f32 %v2083, %v2088
    %v2093 = vlaneseq
    %v2094 = vshrl.u32 %v2093, 7
    %v2095 = vsub.s32 0, %v2094
    %v2096 = vrot.slane %v2057, %v2095
    %v2098 = vadd.f32 %v2090, %v2096
    %v2099 = vadd.f32 %v2091, %v2096
    %v2100 = vld [vmem:[%s13] sm:$0x1]
    %v2101 = vld [vmem:[%s14] sm:$0x1]
    %v2102 = vsel %vm171, %v2098, 0.0
    %2103 = vadd.xlane.f32.xlu0 %v2102
    %v2104 = vpop.xlane.xlu0 %2103
    %v2105 = vsel %vm171, %v2099, 0.0
    %2106 = vadd.xlane.f32.xlu0 %v2105
    %v2107 = vpop.xlane.xlu0 %2106
    %v2108 = vmul.f32 %v2104, %v852
    %v2109 = vmul.f32 %v2107, %v852
    %v2110 = vsub.f32 %v2098, %v2108
    %v2111 = vsub.f32 %v2099, %v2109
    %v2112 = vmul.f32 %v2110, %v2110
    %v2113 = vmul.f32 %v2111, %v2111
    %v2114 = vsel %vm171, %v2112, 0.0
    %2115 = vadd.xlane.f32.xlu0 %v2114
    %v2116 = vpop.xlane.xlu0 %2115
    %v2117 = vsel %vm171, %v2113, 0.0
    %2118 = vadd.xlane.f32.xlu0 %v2117
    %v2119 = vpop.xlane.xlu0 %2118
    %v2120 = vmul.f32 %v2116, %v852
    %v2121 = vmul.f32 %v2119, %v852
    %v2122 = vadd.f32 %v2120, 1e-05
    %v2123 = vadd.f32 %v2121, 1e-05
    %v2124 = vrsqrt.pop %v2122
    %v2125 = vrsqrt.pop %v2123
    %v2126 = vmul.f32 %v2110, %v2124
    %v2127 = vmul.f32 %v2111, %v2125
    %v2129 = vlaneseq
    %v2130 = vshrl.u32 %v2129, 7
    %v2131 = vsub.s32 0, %v2130
    %v2132 = vrot.slane %v2100, %v2131
    %v2134 = vmul.f32 %v2126, %v2132
    %v2135 = vmul.f32 %v2127, %v2132
    %v2137 = vlaneseq
    %v2138 = vshrl.u32 %v2137, 7
    %v2139 = vsub.s32 0, %v2138
    %v2140 = vrot.slane %v2101, %v2139
    %v2142 = vadd.f32 %v2134, %v2140
    %v2143 = vadd.f32 %v2135, %v2140
    %v2144 = vld [vmem:[%s15] sm:$0xff]
    %v2145 = vld [vmem:[%s15 + $0x8] sm:$0xff]
    %v2146 = vld [vmem:[%s15 + $0x10] sm:$0xff]
    %v2147 = vld [vmem:[%s15 + $0x18] sm:$0xff]
    %v2148 = vld [vmem:[%s16] sm:$0x1]
    %v2150 = vlaneseq
    %v2151 = vshrl.u32 %v2150, 7
    %v2152 = vsub.s32 0, %v2151
    %v2153 = vrot.slane %v2148, %v2152
    %v2156 = vsel %vm171, %v2142, 0
    %v2159 = vsel %vm171, %v2143, 0
    %2161 = vmatprep.subr.mxu0 0.0
    %2162 = vmatpush1.msra.mxu0 %v2144
    %2163 = vmatprep.subr.mxu0 0.0
    %2164 = vmatpush1.msra.mxu0 %v2145
    %2165 = vmatprep.subr.mxu0 0.0
    %2166 = vmatpush1.msra.mxu0 %v2146
    %2167 = vmatprep.subr.mxu0 0.0
    %2168 = vmatpush1.msra.mxu0 %v2147
    %2169 = vmatprep.subr.mxu0 0.0
    %2170 = vmatpush1.msra.mxu0 0.0
    %2171 = vmatprep.subr.mxu0 0.0
    %2172 = vmatpush1.msra.mxu0 0.0
    %2173 = vmatprep.subr.mxu0 0.0
    %2174 = vmatpush1.msra.mxu0 0.0
    %2175 = vmatprep.subr.mxu0 0.0
    %2176 = vmatpush1.msra.mxu0 0.0
    %2177 = vmatprep.subr.mxu0 0.0
    %2178 = vmatpush1.msra.mxu0 0.0
    %2179 = vmatprep.subr.mxu0 0.0
    %2180 = vmatpush1.msra.mxu0 0.0
    %2181 = vmatprep.subr.mxu0 0.0
    %2182 = vmatpush1.msra.mxu0 0.0
    %2183 = vmatprep.subr.mxu0 0.0
    %2184 = vmatpush1.msra.mxu0 0.0
    %2185 = vmatprep.subr.mxu0 0.0
    %2186 = vmatpush1.msra.mxu0 0.0
    %2187 = vmatprep.subr.mxu0 0.0
    %2188 = vmatpush1.msra.mxu0 0.0
    %2189 = vmatprep.subr.mxu0 0.0
    %2190 = vmatpush1.msra.mxu0 0.0
    %2191 = vmatprep.subr.mxu0 0.0
    %2192 = vmatpush1.msra.mxu0 0.0
    %2193 = vmatprep.subr.mxu0 0.0
    %2194 = vmatpush1.msra.mxu0 0.0
    %2195 = vmatprep.subr.mxu0 0.0
    %2196 = vmatpush1.msra.mxu0 0.0
    %2197 = vmatprep.subr.mxu0 0.0
    %2198 = vmatpush1.msra.mxu0 0.0
    %2199 = vmatprep.subr.mxu0 0.0
    %2200 = vmatpush1.msra.mxu0 0.0
    %2201 = vmatprep.subr.mxu0 0.0
    %2202 = vmatpush1.msra.mxu0 0.0
    %2203 = vmatprep.subr.mxu0 0.0
    %2204 = vmatpush1.msra.mxu0 0.0
    %2205 = vmatprep.subr.mxu0 0.0
    %2206 = vmatpush1.msra.mxu0 0.0
    %2207 = vmatprep.subr.mxu0 0.0
    %2208 = vmatpush1.msra.mxu0 0.0
    %2209 = vmatprep.subr.mxu0 0.0
    %2210 = vmatpush1.msra.mxu0 0.0
    %2211 = vmatprep.subr.mxu0 0.0
    %2212 = vmatpush1.msra.mxu0 0.0
    %2213 = vmatprep.subr.mxu0 0.0
    %2214 = vmatpush1.msra.mxu0 0.0
    %2215 = vmatprep.subr.mxu0 0.0
    %2216 = vmatpush1.msra.mxu0 0.0
    %2217 = vmatprep.subr.mxu0 0.0
    %2218 = vmatpush1.msra.mxu0 0.0
    %2219 = vmatprep.subr.mxu0 0.0
    %2220 = vmatpush1.msra.mxu0 0.0
    %2221 = vmatprep.subr.mxu0 0.0
    %2222 = vmatpush1.msra.mxu0 0.0
    %2223 = vmatprep.subr.mxu0 0.0
    %2224 = vmatpush1.msra.mxu0 0.0
    %2225 = vmatprep.mubr.f32.mxu0 0.0
    %2226 = vmatmul.mubr.f32.gmra.mrb[0].mxu0 %v2156
    %v2227 = vpop.f32.mrb[0].mxu0
    %v2228 = vadd.f32 %v2153, %v2227
    %v2229 = vpop.f32.mrb[0].mxu0
    %2230 = vmatprep.mubr.f32.mxu0 0.0
    %2231 = vmatmul.mubr.f32.gmra.mrb[0].mxu0 %v2159
    %v2232 = vpop.f32.mrb[0].mxu0
    %v2233 = vadd.f32 %v2153, %v2232
    %v2234 = vpop.f32.mrb[0].mxu0
    %2235 = vdwg.mxu0
    %2236 = vst [vmem:[#allocation14] sm:$0xff] %v2228
    %2237 = vst [vmem:[#allocation14 + $0x8] sm:$0xff] %v2233
    // Predicated region
    $region98: #{tpu_custom_call.1} parent=1 // pred_check
      _
    $region99: #{tpu_custom_call.1} parent=1 // pred_check_branch
      %2239 = sbr.rel (0) target = $region101
    $region100: #{tpu_custom_call.1} parent=1 // pred_region
      %s2241 = ssub.s32 256, 256
      %2242 = vsyncadd [#allocation4], %s2241
      %s2243 = sshll.u32 [#allocation14], 4
      %s2244 = int_to_ptr.vmem [resolvable:$true] %s2243
      %2249 = dma.vmem_to_hbm [thread:$0]  %s2244, 256, %s17, [#allocation4], 128, 128, 8
    $region101: #{tpu_custom_call.1} parent=1 // pred_fallthru
      _
    // Predicated region
    $region102: #{tpu_custom_call.1} parent=1 // pred_check
      _
    $region103: #{tpu_custom_call.1} parent=1 // pred_check_branch
      %2251 = sbr.rel (0) target = $region105
    $region104: #{tpu_custom_call.1} parent=1 // pred_region
      %2252 = dma.done [#allocation4], 256
    $region105: #{tpu_custom_call.1} parent=1 // pred_fallthru
      _
    %2253 = vsyncpa [#allocation3], 1
    %2254 = vsyncpa [#allocation6], 1
    %2255 = vsyncpa [#allocation9], 1
    %2256 = vsyncpa [#allocation12], 1
    %2257 = vsyncpa [#allocation4], 1

</llo_original>
